<compile_context>
chip_gen: v7x
topology: tpu7x:2x2x1
jax: 0.10.0
libtpu: 0.0.40
codegen_flags: <defaults>
</compile_context>

<pallas_src>
import functools

import jax
import jax.numpy as jnp
from jax import lax
from jax.experimental import pallas as pl
from jax.experimental.pallas import tpu as pltpu


# ----------------------------------------------------------------------------
# Fused Pallas kernel: all LSTM layers over the full sequence, one call.
# ----------------------------------------------------------------------------
def _fused_decoder_lstm_kernel(*refs, num_layers, hidden, seq, batch):
    """refs = (x_ref, [wih_ref, whh_ref, b_ref] * num_layers, out_ref)

    x_ref:   (T*Bp, Din)  time-major rows (row r = timestep r//Bp, batch r%Bp)
    wih_ref: (Din, 4H)    whh_ref: (H, 4H)   b_ref: (1, 4H)  [b_ih + b_hh]
    out_ref: (Bp, T*H)    lane-dense output slab (last layer's h, all steps)
    """
    x_ref = refs[0]
    out_ref = refs[-1]
    layer_refs = refs[1:-1]
    T, B, H = seq, batch, hidden

    x_flat = x_ref[...].astype(jnp.float32)             # (T*Bp, Din)

    hs = []
    for layer in range(num_layers):
        wih_ref, whh_ref, b_ref = layer_refs[3 * layer:3 * layer + 3]

        # Hoisted input projection for ALL timesteps: one MXU matmul.
        gx = (jnp.dot(x_flat, wih_ref[...], preferred_element_type=jnp.float32)
              + b_ref[...])                              # (T*Bp, 4H)
        whh = whh_ref[...]                               # (H, 4H)

        h = None
        c = None
        hs = []
        for t in range(T):                               # static unroll (T static)
            gx_t = gx[t * B:(t + 1) * B, :]              # sublane-aligned (B mult of 8)
            if t == 0:
                gates = gx_t                             # h0 = 0 -> skip h@W_hh
            else:
                gates = gx_t + jnp.dot(
                    h, whh, preferred_element_type=jnp.float32)   # (B, 4H)
            # PyTorch gate order i, f, g, o.  Sigmoid over the full 4H vector
            # (i, f, o are used), tanh only over the H-wide g slice.
            sg = jax.nn.sigmoid(gates)
            i = sg[:, 0 * H:1 * H]
            f = sg[:, 1 * H:2 * H]
            g = jnp.tanh(gates[:, 2 * H:3 * H])
            o = sg[:, 3 * H:4 * H]
            if t == 0:
                c = i * g                                # c0 = 0 -> skip f*c
            else:
                c = f * c + i * g
            h = o * jnp.tanh(c)
            hs.append(h)

        # Inter-layer activation stays in-kernel (no HBM round-trip).
        x_flat = jnp.concatenate(hs, axis=0)             # (T*Bp, H)

    # Single lane-dense store: (Bp, T*H), T*H multiple of 128 at these shapes.
    out_ref[...] = jnp.concatenate(hs, axis=-1).astype(out_ref.dtype)


# ----------------------------------------------------------------------------
# Wrapper: batch-first glue around the fused kernel.
# ----------------------------------------------------------------------------
def decoder_rnn_forward(x, prepared_params):
    """x: (B, T, hidden_size)  ->  out: (B, T, output_size)."""
    B, T, d_in = x.shape
    H = prepared_params[0][1].shape[0]                   # whh_t is (H, 4H)
    num_layers = len(prepared_params)

    # Pad batch to a multiple of 8 so per-timestep slices in the kernel are
    # sublane-tile aligned; padded rows are computed and discarded.
    Bp = max(8, ((B + 7) // 8) * 8)
    x_p = x.astype(jnp.float32)
    if Bp != B:
        x_p = jnp.pad(x_p, ((0, Bp - B), (0, 0), (0, 0)))

    # Time-major, flattened rows: (T*Bp, Din).
    x_tm_flat = jnp.transpose(x_p, (1, 0, 2)).reshape(T * Bp, d_in)

    flat_params = []
    for (wih_t, whh_t, bias) in prepared_params:
        flat_params.extend([wih_t, whh_t, bias])

    kernel = functools.partial(_fused_decoder_lstm_kernel,
                               num_layers=num_layers, hidden=H, seq=T, batch=Bp)
    out_flat = pl.pallas_call(
        kernel,
        out_shape=jax.ShapeDtypeStruct((Bp, T * H), jnp.float32),
        in_specs=[pl.BlockSpec(memory_space=pltpu.MemorySpace.VMEM)]
                 * (1 + len(flat_params)),
        out_specs=pl.BlockSpec(memory_space=pltpu.MemorySpace.VMEM),
    )(x_tm_flat, *flat_params)

    return out_flat[:B].reshape(B, T, H)


# ----------------------------------------------------------------------------
# Parameter init (mirrors module __init__) and one-time prep (transposes/bias).
# ----------------------------------------------------------------------------
def _orthogonal(key, shape, gain):
    rows, cols = shape
    a = jax.random.normal(key, (max(rows, cols), min(rows, cols)), jnp.float32)
    q, r = jnp.linalg.qr(a)
    q = q * jnp.sign(jnp.diag(r))[None, :]
    if rows < cols:
        q = q.T
    return gain * q[:rows, :cols]


def init_decoder_params(key, hidden_size, output_size, num_layers):
    H = output_size
    k = 1.0 / jnp.sqrt(jnp.float32(H))
    params = []
    for layer in range(num_layers):
        d_in = hidden_size if layer == 0 else output_size
        key, k0, k1, k2, k3 = jax.random.split(key, 5)
        if layer == 0:
            # nn.init.orthogonal_ with gain=sqrt(2) on layer-0 weights only.
            w_ih = _orthogonal(k0, (4 * H, d_in), jnp.sqrt(2.0))
            w_hh = _orthogonal(k1, (4 * H, H), jnp.sqrt(2.0))
        else:
            w_ih = jax.random.uniform(k0, (4 * H, d_in), jnp.float32, -k, k)
            w_hh = jax.random.uniform(k1, (4 * H, H), jnp.float32, -k, k)
        b_ih = jax.random.uniform(k2, (4 * H,), jnp.float32, -k, k)
        b_hh = jax.random.uniform(k3, (4 * H,), jnp.float32, -k, k)
        params.append((w_ih, w_hh, b_ih, b_hh))
    return params


def prepare_decoder_params(params):
    """One-time conversion: (4H,Din)/(4H,H)/(4H,)x2 -> (Din,4H)/(H,4H)/(1,4H)."""
    prepared = []
    for (w_ih, w_hh, b_ih, b_hh) in params:
        prepared.append((jnp.transpose(w_ih),
                         jnp.transpose(w_hh),
                         (b_ih + b_hh).reshape(1, -1)))
    return prepared


# ----------------------------------------------------------------------------
# Pure-JAX reference (for correctness check of the Pallas kernel).
# ----------------------------------------------------------------------------
def decoder_rnn_reference(x, params):
    y = x.astype(jnp.float32)
    B = x.shape[0]
    for (w_ih, w_hh, b_ih, b_hh) in params:
        H = w_hh.shape[1]

        def cell(carry, x_t):
            h, c = carry
            gates = x_t @ w_ih.T + b_ih + h @ w_hh.T + b_hh
            i = jax.nn.sigmoid(gates[:, 0 * H:1 * H])
            f = jax.nn.sigmoid(gates[:, 1 * H:2 * H])
            g = jnp.tanh(gates[:, 2 * H:3 * H])
            o = jax.nn.sigmoid(gates[:, 3 * H:4 * H])
            c = f * c + i * g
            h = o * jnp.tanh(c)
            return (h, c), h

        h0 = jnp.zeros((B, H), jnp.float32)
        c0 = jnp.zeros((B, H), jnp.float32)
        _, out = lax.scan(cell, (h0, c0), jnp.transpose(y, (1, 0, 2)))
        y = jnp.transpose(out, (1, 0, 2))
    return y


if __name__ == "__main__":
    hidden_size = 32     # LSTM input feature size
    output_size = 32     # LSTM hidden / output size
    num_layers = 2
    batch, seq = 2, 8

    key = jax.random.PRNGKey(0)
    kx, kp = jax.random.split(key)
    x = jax.random.normal(kx, (batch, seq, hidden_size), jnp.float32)
    params = init_decoder_params(kp, hidden_size, output_size, num_layers)
    prepared = prepare_decoder_params(params)   # once, outside the hot path

    out = decoder_rnn_forward(x, prepared)
    out = jax.block_until_ready(out)

    ref = decoder_rnn_reference(x, params)
    assert out.shape == (batch, seq, output_size)
    assert jnp.allclose(out, ref, atol=1e-5, rtol=1e-5), "mismatch vs reference"

    print("KERNEL_OK")
</pallas_src>

<mosaic_0001>
module attributes {stable_mosaic.version = 11 : i64} {
  func.func @_fused_decoder_lstm_kernel(%arg0: memref<64x32xf32, #tpu.memory_space<vmem>>, %arg1: memref<32x128xf32, #tpu.memory_space<vmem>>, %arg2: memref<32x128xf32, #tpu.memory_space<vmem>>, %arg3: memref<1x128xf32, #tpu.memory_space<vmem>>, %arg4: memref<32x128xf32, #tpu.memory_space<vmem>>, %arg5: memref<32x128xf32, #tpu.memory_space<vmem>>, %arg6: memref<1x128xf32, #tpu.memory_space<vmem>>, %arg7: memref<8x256xf32, #tpu.memory_space<vmem>>) attributes {dimension_semantics = [], scalar_prefetch = 0 : i64, scratch_operands = 0 : i64, tpu.core_type = #tpu.core_type<tc>} {
    %c0 = arith.constant 0 : index
    %c0_0 = arith.constant 0 : index
    %0 = vector.load %arg0[%c0, %c0_0] : memref<64x32xf32, #tpu.memory_space<vmem>>, vector<64x32xf32>
    %c0_1 = arith.constant 0 : index
    %c0_2 = arith.constant 0 : index
    %1 = vector.load %arg1[%c0_1, %c0_2] : memref<32x128xf32, #tpu.memory_space<vmem>>, vector<32x128xf32>
    %cst = arith.constant dense<0.000000e+00> : vector<64x128xf32>
    %2 = tpu.matmul %0, %1, %cst {dimension_numbers = #tpu.dot_dimension_numbers<[1], [0], [0], [1], [0, 0, 1, 1], [], []>} : vector<64x32xf32>, vector<32x128xf32>, vector<64x128xf32> -> vector<64x128xf32>
    %c0_3 = arith.constant 0 : index
    %c0_4 = arith.constant 0 : index
    %3 = vector.load %arg3[%c0_3, %c0_4] : memref<1x128xf32, #tpu.memory_space<vmem>>, vector<1x128xf32>
    %4 = vector.broadcast %3 : vector<1x128xf32> to vector<64x128xf32>
    %5 = arith.addf %2, %4 : vector<64x128xf32>
    %c0_5 = arith.constant 0 : index
    %c0_6 = arith.constant 0 : index
    %6 = vector.load %arg2[%c0_5, %c0_6] : memref<32x128xf32, #tpu.memory_space<vmem>>, vector<32x128xf32>
    %7 = vector.extract_strided_slice %5 {offsets = [0, 0], sizes = [8, 128], strides = [1, 1]} : vector<64x128xf32> to vector<8x128xf32>
    %8 = arith.negf %7 : vector<8x128xf32>
    %9 = math.exp %8 : vector<8x128xf32>
    %cst_7 = arith.constant 1.000000e+00 : f32
    %10 = vector.broadcast %cst_7 : f32 to vector<8x128xf32>
    %11 = arith.addf %10, %9 : vector<8x128xf32>
    %12 = arith.divf %10, %11 : vector<8x128xf32>
    %13 = vector.extract_strided_slice %12 {offsets = [0, 0], sizes = [8, 32], strides = [1, 1]} : vector<8x128xf32> to vector<8x32xf32>
    %14 = vector.extract_strided_slice %7 {offsets = [0, 64], sizes = [8, 32], strides = [1, 1]} : vector<8x128xf32> to vector<8x32xf32>
    %15 = math.tanh %14 : vector<8x32xf32>
    %16 = vector.extract_strided_slice %12 {offsets = [0, 96], sizes = [8, 32], strides = [1, 1]} : vector<8x128xf32> to vector<8x32xf32>
    %17 = arith.mulf %13, %15 : vector<8x32xf32>
    %18 = math.tanh %17 : vector<8x32xf32>
    %19 = arith.mulf %16, %18 : vector<8x32xf32>
    %20 = vector.extract_strided_slice %5 {offsets = [8, 0], sizes = [8, 128], strides = [1, 1]} : vector<64x128xf32> to vector<8x128xf32>
    %cst_8 = arith.constant dense<0.000000e+00> : vector<8x128xf32>
    %21 = tpu.matmul %19, %6, %cst_8 {dimension_numbers = #tpu.dot_dimension_numbers<[1], [0], [0], [1], [0, 0, 1, 1], [], []>} : vector<8x32xf32>, vector<32x128xf32>, vector<8x128xf32> -> vector<8x128xf32>
    %22 = arith.addf %20, %21 : vector<8x128xf32>
    %23 = arith.negf %22 : vector<8x128xf32>
    %24 = math.exp %23 : vector<8x128xf32>
    %cst_9 = arith.constant 1.000000e+00 : f32
    %25 = vector.broadcast %cst_9 : f32 to vector<8x128xf32>
    %26 = arith.addf %25, %24 : vector<8x128xf32>
    %27 = arith.divf %25, %26 : vector<8x128xf32>
    %28 = vector.extract_strided_slice %27 {offsets = [0, 0], sizes = [8, 32], strides = [1, 1]} : vector<8x128xf32> to vector<8x32xf32>
    %29 = vector.extract_strided_slice %27 {offsets = [0, 32], sizes = [8, 32], strides = [1, 1]} : vector<8x128xf32> to vector<8x32xf32>
    %30 = vector.extract_strided_slice %22 {offsets = [0, 64], sizes = [8, 32], strides = [1, 1]} : vector<8x128xf32> to vector<8x32xf32>
    %31 = math.tanh %30 : vector<8x32xf32>
    %32 = vector.extract_strided_slice %27 {offsets = [0, 96], sizes = [8, 32], strides = [1, 1]} : vector<8x128xf32> to vector<8x32xf32>
    %33 = arith.mulf %29, %17 : vector<8x32xf32>
    %34 = arith.mulf %28, %31 : vector<8x32xf32>
    %35 = arith.addf %33, %34 : vector<8x32xf32>
    %36 = math.tanh %35 : vector<8x32xf32>
    %37 = arith.mulf %32, %36 : vector<8x32xf32>
    %38 = vector.extract_strided_slice %5 {offsets = [16, 0], sizes = [8, 128], strides = [1, 1]} : vector<64x128xf32> to vector<8x128xf32>
    %cst_10 = arith.constant dense<0.000000e+00> : vector<8x128xf32>
    %39 = tpu.matmul %37, %6, %cst_10 {dimension_numbers = #tpu.dot_dimension_numbers<[1], [0], [0], [1], [0, 0, 1, 1], [], []>} : vector<8x32xf32>, vector<32x128xf32>, vector<8x128xf32> -> vector<8x128xf32>
    %40 = arith.addf %38, %39 : vector<8x128xf32>
    %41 = arith.negf %40 : vector<8x128xf32>
    %42 = math.exp %41 : vector<8x128xf32>
    %cst_11 = arith.constant 1.000000e+00 : f32
    %43 = vector.broadcast %cst_11 : f32 to vector<8x128xf32>
    %44 = arith.addf %43, %42 : vector<8x128xf32>
    %45 = arith.divf %43, %44 : vector<8x128xf32>
    %46 = vector.extract_strided_slice %45 {offsets = [0, 0], sizes = [8, 32], strides = [1, 1]} : vector<8x128xf32> to vector<8x32xf32>
    %47 = vector.extract_strided_slice %45 {offsets = [0, 32], sizes = [8, 32], strides = [1, 1]} : vector<8x128xf32> to vector<8x32xf32>
    %48 = vector.extract_strided_slice %40 {offsets = [0, 64], sizes = [8, 32], strides = [1, 1]} : vector<8x128xf32> to vector<8x32xf32>
    %49 = math.tanh %48 : vector<8x32xf32>
    %50 = vector.extract_strided_slice %45 {offsets = [0, 96], sizes = [8, 32], strides = [1, 1]} : vector<8x128xf32> to vector<8x32xf32>
    %51 = arith.mulf %47, %35 : vector<8x32xf32>
    %52 = arith.mulf %46, %49 : vector<8x32xf32>
    %53 = arith.addf %51, %52 : vector<8x32xf32>
    %54 = math.tanh %53 : vector<8x32xf32>
    %55 = arith.mulf %50, %54 : vector<8x32xf32>
    %56 = vector.extract_strided_slice %5 {offsets = [24, 0], sizes = [8, 128], strides = [1, 1]} : vector<64x128xf32> to vector<8x128xf32>
    %cst_12 = arith.constant dense<0.000000e+00> : vector<8x128xf32>
    %57 = tpu.matmul %55, %6, %cst_12 {dimension_numbers = #tpu.dot_dimension_numbers<[1], [0], [0], [1], [0, 0, 1, 1], [], []>} : vector<8x32xf32>, vector<32x128xf32>, vector<8x128xf32> -> vector<8x128xf32>
    %58 = arith.addf %56, %57 : vector<8x128xf32>
    %59 = arith.negf %58 : vector<8x128xf32>
    %60 = math.exp %59 : vector<8x128xf32>
    %cst_13 = arith.constant 1.000000e+00 : f32
    %61 = vector.broadcast %cst_13 : f32 to vector<8x128xf32>
    %62 = arith.addf %61, %60 : vector<8x128xf32>
    %63 = arith.divf %61, %62 : vector<8x128xf32>
    %64 = vector.extract_strided_slice %63 {offsets = [0, 0], sizes = [8, 32], strides = [1, 1]} : vector<8x128xf32> to vector<8x32xf32>
    %65 = vector.extract_strided_slice %63 {offsets = [0, 32], sizes = [8, 32], strides = [1, 1]} : vector<8x128xf32> to vector<8x32xf32>
    %66 = vector.extract_strided_slice %58 {offsets = [0, 64], sizes = [8, 32], strides = [1, 1]} : vector<8x128xf32> to vector<8x32xf32>
    %67 = math.tanh %66 : vector<8x32xf32>
    %68 = vector.extract_strided_slice %63 {offsets = [0, 96], sizes = [8, 32], strides = [1, 1]} : vector<8x128xf32> to vector<8x32xf32>
    %69 = arith.mulf %65, %53 : vector<8x32xf32>
    %70 = arith.mulf %64, %67 : vector<8x32xf32>
    %71 = arith.addf %69, %70 : vector<8x32xf32>
    %72 = math.tanh %71 : vector<8x32xf32>
    %73 = arith.mulf %68, %72 : vector<8x32xf32>
    %74 = vector.extract_strided_slice %5 {offsets = [32, 0], sizes = [8, 128], strides = [1, 1]} : vector<64x128xf32> to vector<8x128xf32>
    %cst_14 = arith.constant dense<0.000000e+00> : vector<8x128xf32>
    %75 = tpu.matmul %73, %6, %cst_14 {dimension_numbers = #tpu.dot_dimension_numbers<[1], [0], [0], [1], [0, 0, 1, 1], [], []>} : vector<8x32xf32>, vector<32x128xf32>, vector<8x128xf32> -> vector<8x128xf32>
    %76 = arith.addf %74, %75 : vector<8x128xf32>
    %77 = arith.negf %76 : vector<8x128xf32>
    %78 = math.exp %77 : vector<8x128xf32>
    %cst_15 = arith.constant 1.000000e+00 : f32
    %79 = vector.broadcast %cst_15 : f32 to vector<8x128xf32>
    %80 = arith.addf %79, %78 : vector<8x128xf32>
    %81 = arith.divf %79, %80 : vector<8x128xf32>
    %82 = vector.extract_strided_slice %81 {offsets = [0, 0], sizes = [8, 32], strides = [1, 1]} : vector<8x128xf32> to vector<8x32xf32>
    %83 = vector.extract_strided_slice %81 {offsets = [0, 32], sizes = [8, 32], strides = [1, 1]} : vector<8x128xf32> to vector<8x32xf32>
    %84 = vector.extract_strided_slice %76 {offsets = [0, 64], sizes = [8, 32], strides = [1, 1]} : vector<8x128xf32> to vector<8x32xf32>
    %85 = math.tanh %84 : vector<8x32xf32>
    %86 = vector.extract_strided_slice %81 {offsets = [0, 96], sizes = [8, 32], strides = [1, 1]} : vector<8x128xf32> to vector<8x32xf32>
    %87 = arith.mulf %83, %71 : vector<8x32xf32>
    %88 = arith.mulf %82, %85 : vector<8x32xf32>
    %89 = arith.addf %87, %88 : vector<8x32xf32>
    %90 = math.tanh %89 : vector<8x32xf32>
    %91 = arith.mulf %86, %90 : vector<8x32xf32>
    %92 = vector.extract_strided_slice %5 {offsets = [40, 0], sizes = [8, 128], strides = [1, 1]} : vector<64x128xf32> to vector<8x128xf32>
    %cst_16 = arith.constant dense<0.000000e+00> : vector<8x128xf32>
    %93 = tpu.matmul %91, %6, %cst_16 {dimension_numbers = #tpu.dot_dimension_numbers<[1], [0], [0], [1], [0, 0, 1, 1], [], []>} : vector<8x32xf32>, vector<32x128xf32>, vector<8x128xf32> -> vector<8x128xf32>
    %94 = arith.addf %92, %93 : vector<8x128xf32>
    %95 = arith.negf %94 : vector<8x128xf32>
    %96 = math.exp %95 : vector<8x128xf32>
    %cst_17 = arith.constant 1.000000e+00 : f32
    %97 = vector.broadcast %cst_17 : f32 to vector<8x128xf32>
    %98 = arith.addf %97, %96 : vector<8x128xf32>
    %99 = arith.divf %97, %98 : vector<8x128xf32>
    %100 = vector.extract_strided_slice %99 {offsets = [0, 0], sizes = [8, 32], strides = [1, 1]} : vector<8x128xf32> to vector<8x32xf32>
    %101 = vector.extract_strided_slice %99 {offsets = [0, 32], sizes = [8, 32], strides = [1, 1]} : vector<8x128xf32> to vector<8x32xf32>
    %102 = vector.extract_strided_slice %94 {offsets = [0, 64], sizes = [8, 32], strides = [1, 1]} : vector<8x128xf32> to vector<8x32xf32>
    %103 = math.tanh %102 : vector<8x32xf32>
    %104 = vector.extract_strided_slice %99 {offsets = [0, 96], sizes = [8, 32], strides = [1, 1]} : vector<8x128xf32> to vector<8x32xf32>
    %105 = arith.mulf %101, %89 : vector<8x32xf32>
    %106 = arith.mulf %100, %103 : vector<8x32xf32>
    %107 = arith.addf %105, %106 : vector<8x32xf32>
    %108 = math.tanh %107 : vector<8x32xf32>
    %109 = arith.mulf %104, %108 : vector<8x32xf32>
    %110 = vector.extract_strided_slice %5 {offsets = [48, 0], sizes = [8, 128], strides = [1, 1]} : vector<64x128xf32> to vector<8x128xf32>
    %cst_18 = arith.constant dense<0.000000e+00> : vector<8x128xf32>
    %111 = tpu.matmul %109, %6, %cst_18 {dimension_numbers = #tpu.dot_dimension_numbers<[1], [0], [0], [1], [0, 0, 1, 1], [], []>} : vector<8x32xf32>, vector<32x128xf32>, vector<8x128xf32> -> vector<8x128xf32>
    %112 = arith.addf %110, %111 : vector<8x128xf32>
    %113 = arith.negf %112 : vector<8x128xf32>
    %114 = math.exp %113 : vector<8x128xf32>
    %cst_19 = arith.constant 1.000000e+00 : f32
    %115 = vector.broadcast %cst_19 : f32 to vector<8x128xf32>
    %116 = arith.addf %115, %114 : vector<8x128xf32>
    %117 = arith.divf %115, %116 : vector<8x128xf32>
    %118 = vector.extract_strided_slice %117 {offsets = [0, 0], sizes = [8, 32], strides = [1, 1]} : vector<8x128xf32> to vector<8x32xf32>
    %119 = vector.extract_strided_slice %117 {offsets = [0, 32], sizes = [8, 32], strides = [1, 1]} : vector<8x128xf32> to vector<8x32xf32>
    %120 = vector.extract_strided_slice %112 {offsets = [0, 64], sizes = [8, 32], strides = [1, 1]} : vector<8x128xf32> to vector<8x32xf32>
    %121 = math.tanh %120 : vector<8x32xf32>
    %122 = vector.extract_strided_slice %117 {offsets = [0, 96], sizes = [8, 32], strides = [1, 1]} : vector<8x128xf32> to vector<8x32xf32>
    %123 = arith.mulf %119, %107 : vector<8x32xf32>
    %124 = arith.mulf %118, %121 : vector<8x32xf32>
    %125 = arith.addf %123, %124 : vector<8x32xf32>
    %126 = math.tanh %125 : vector<8x32xf32>
    %127 = arith.mulf %122, %126 : vector<8x32xf32>
    %128 = vector.extract_strided_slice %5 {offsets = [56, 0], sizes = [8, 128], strides = [1, 1]} : vector<64x128xf32> to vector<8x128xf32>
    %cst_20 = arith.constant dense<0.000000e+00> : vector<8x128xf32>
    %129 = tpu.matmul %127, %6, %cst_20 {dimension_numbers = #tpu.dot_dimension_numbers<[1], [0], [0], [1], [0, 0, 1, 1], [], []>} : vector<8x32xf32>, vector<32x128xf32>, vector<8x128xf32> -> vector<8x128xf32>
    %130 = arith.addf %128, %129 : vector<8x128xf32>
    %131 = arith.negf %130 : vector<8x128xf32>
    %132 = math.exp %131 : vector<8x128xf32>
    %cst_21 = arith.constant 1.000000e+00 : f32
    %133 = vector.broadcast %cst_21 : f32 to vector<8x128xf32>
    %134 = arith.addf %133, %132 : vector<8x128xf32>
    %135 = arith.divf %133, %134 : vector<8x128xf32>
    %136 = vector.extract_strided_slice %135 {offsets = [0, 0], sizes = [8, 32], strides = [1, 1]} : vector<8x128xf32> to vector<8x32xf32>
    %137 = vector.extract_strided_slice %135 {offsets = [0, 32], sizes = [8, 32], strides = [1, 1]} : vector<8x128xf32> to vector<8x32xf32>
    %138 = vector.extract_strided_slice %130 {offsets = [0, 64], sizes = [8, 32], strides = [1, 1]} : vector<8x128xf32> to vector<8x32xf32>
    %139 = math.tanh %138 : vector<8x32xf32>
    %140 = vector.extract_strided_slice %135 {offsets = [0, 96], sizes = [8, 32], strides = [1, 1]} : vector<8x128xf32> to vector<8x32xf32>
    %141 = arith.mulf %137, %125 : vector<8x32xf32>
    %142 = arith.mulf %136, %139 : vector<8x32xf32>
    %143 = arith.addf %141, %142 : vector<8x32xf32>
    %144 = math.tanh %143 : vector<8x32xf32>
    %145 = arith.mulf %140, %144 : vector<8x32xf32>
    %146 = tpu.concatenate %19, %37, %55, %73, %91, %109, %127, %145 in 0 : vector<8x32xf32>, vector<8x32xf32>, vector<8x32xf32>, vector<8x32xf32>, vector<8x32xf32>, vector<8x32xf32>, vector<8x32xf32>, vector<8x32xf32> -> vector<64x32xf32>
    %c0_22 = arith.constant 0 : index
    %c0_23 = arith.constant 0 : index
    %147 = vector.load %arg4[%c0_22, %c0_23] : memref<32x128xf32, #tpu.memory_space<vmem>>, vector<32x128xf32>
    %cst_24 = arith.constant dense<0.000000e+00> : vector<64x128xf32>
    %148 = tpu.matmul %146, %147, %cst_24 {dimension_numbers = #tpu.dot_dimension_numbers<[1], [0], [0], [1], [0, 0, 1, 1], [], []>} : vector<64x32xf32>, vector<32x128xf32>, vector<64x128xf32> -> vector<64x128xf32>
    %c0_25 = arith.constant 0 : index
    %c0_26 = arith.constant 0 : index
    %149 = vector.load %arg6[%c0_25, %c0_26] : memref<1x128xf32, #tpu.memory_space<vmem>>, vector<1x128xf32>
    %150 = vector.broadcast %149 : vector<1x128xf32> to vector<64x128xf32>
    %151 = arith.addf %148, %150 : vector<64x128xf32>
    %c0_27 = arith.constant 0 : index
    %c0_28 = arith.constant 0 : index
    %152 = vector.load %arg5[%c0_27, %c0_28] : memref<32x128xf32, #tpu.memory_space<vmem>>, vector<32x128xf32>
    %153 = vector.extract_strided_slice %151 {offsets = [0, 0], sizes = [8, 128], strides = [1, 1]} : vector<64x128xf32> to vector<8x128xf32>
    %154 = arith.negf %153 : vector<8x128xf32>
    %155 = math.exp %154 : vector<8x128xf32>
    %cst_29 = arith.constant 1.000000e+00 : f32
    %156 = vector.broadcast %cst_29 : f32 to vector<8x128xf32>
    %157 = arith.addf %156, %155 : vector<8x128xf32>
    %158 = arith.divf %156, %157 : vector<8x128xf32>
    %159 = vector.extract_strided_slice %158 {offsets = [0, 0], sizes = [8, 32], strides = [1, 1]} : vector<8x128xf32> to vector<8x32xf32>
    %160 = vector.extract_strided_slice %153 {offsets = [0, 64], sizes = [8, 32], strides = [1, 1]} : vector<8x128xf32> to vector<8x32xf32>
    %161 = math.tanh %160 : vector<8x32xf32>
    %162 = vector.extract_strided_slice %158 {offsets = [0, 96], sizes = [8, 32], strides = [1, 1]} : vector<8x128xf32> to vector<8x32xf32>
    %163 = arith.mulf %159, %161 : vector<8x32xf32>
    %164 = math.tanh %163 : vector<8x32xf32>
    %165 = arith.mulf %162, %164 : vector<8x32xf32>
    %166 = vector.extract_strided_slice %151 {offsets = [8, 0], sizes = [8, 128], strides = [1, 1]} : vector<64x128xf32> to vector<8x128xf32>
    %cst_30 = arith.constant dense<0.000000e+00> : vector<8x128xf32>
    %167 = tpu.matmul %165, %152, %cst_30 {dimension_numbers = #tpu.dot_dimension_numbers<[1], [0], [0], [1], [0, 0, 1, 1], [], []>} : vector<8x32xf32>, vector<32x128xf32>, vector<8x128xf32> -> vector<8x128xf32>
    %168 = arith.addf %166, %167 : vector<8x128xf32>
    %169 = arith.negf %168 : vector<8x128xf32>
    %170 = math.exp %169 : vector<8x128xf32>
    %cst_31 = arith.constant 1.000000e+00 : f32
    %171 = vector.broadcast %cst_31 : f32 to vector<8x128xf32>
    %172 = arith.addf %171, %170 : vector<8x128xf32>
    %173 = arith.divf %171, %172 : vector<8x128xf32>
    %174 = vector.extract_strided_slice %173 {offsets = [0, 0], sizes = [8, 32], strides = [1, 1]} : vector<8x128xf32> to vector<8x32xf32>
    %175 = vector.extract_strided_slice %173 {offsets = [0, 32], sizes = [8, 32], strides = [1, 1]} : vector<8x128xf32> to vector<8x32xf32>
    %176 = vector.extract_strided_slice %168 {offsets = [0, 64], sizes = [8, 32], strides = [1, 1]} : vector<8x128xf32> to vector<8x32xf32>
    %177 = math.tanh %176 : vector<8x32xf32>
    %178 = vector.extract_strided_slice %173 {offsets = [0, 96], sizes = [8, 32], strides = [1, 1]} : vector<8x128xf32> to vector<8x32xf32>
    %179 = arith.mulf %175, %163 : vector<8x32xf32>
    %180 = arith.mulf %174, %177 : vector<8x32xf32>
    %181 = arith.addf %179, %180 : vector<8x32xf32>
    %182 = math.tanh %181 : vector<8x32xf32>
    %183 = arith.mulf %178, %182 : vector<8x32xf32>
    %184 = vector.extract_strided_slice %151 {offsets = [16, 0], sizes = [8, 128], strides = [1, 1]} : vector<64x128xf32> to vector<8x128xf32>
    %cst_32 = arith.constant dense<0.000000e+00> : vector<8x128xf32>
    %185 = tpu.matmul %183, %152, %cst_32 {dimension_numbers = #tpu.dot_dimension_numbers<[1], [0], [0], [1], [0, 0, 1, 1], [], []>} : vector<8x32xf32>, vector<32x128xf32>, vector<8x128xf32> -> vector<8x128xf32>
    %186 = arith.addf %184, %185 : vector<8x128xf32>
    %187 = arith.negf %186 : vector<8x128xf32>
    %188 = math.exp %187 : vector<8x128xf32>
    %cst_33 = arith.constant 1.000000e+00 : f32
    %189 = vector.broadcast %cst_33 : f32 to vector<8x128xf32>
    %190 = arith.addf %189, %188 : vector<8x128xf32>
    %191 = arith.divf %189, %190 : vector<8x128xf32>
    %192 = vector.extract_strided_slice %191 {offsets = [0, 0], sizes = [8, 32], strides = [1, 1]} : vector<8x128xf32> to vector<8x32xf32>
    %193 = vector.extract_strided_slice %191 {offsets = [0, 32], sizes = [8, 32], strides = [1, 1]} : vector<8x128xf32> to vector<8x32xf32>
    %194 = vector.extract_strided_slice %186 {offsets = [0, 64], sizes = [8, 32], strides = [1, 1]} : vector<8x128xf32> to vector<8x32xf32>
    %195 = math.tanh %194 : vector<8x32xf32>
    %196 = vector.extract_strided_slice %191 {offsets = [0, 96], sizes = [8, 32], strides = [1, 1]} : vector<8x128xf32> to vector<8x32xf32>
    %197 = arith.mulf %193, %181 : vector<8x32xf32>
    %198 = arith.mulf %192, %195 : vector<8x32xf32>
    %199 = arith.addf %197, %198 : vector<8x32xf32>
    %200 = math.tanh %199 : vector<8x32xf32>
    %201 = arith.mulf %196, %200 : vector<8x32xf32>
    %202 = vector.extract_strided_slice %151 {offsets = [24, 0], sizes = [8, 128], strides = [1, 1]} : vector<64x128xf32> to vector<8x128xf32>
    %cst_34 = arith.constant dense<0.000000e+00> : vector<8x128xf32>
    %203 = tpu.matmul %201, %152, %cst_34 {dimension_numbers = #tpu.dot_dimension_numbers<[1], [0], [0], [1], [0, 0, 1, 1], [], []>} : vector<8x32xf32>, vector<32x128xf32>, vector<8x128xf32> -> vector<8x128xf32>
    %204 = arith.addf %202, %203 : vector<8x128xf32>
    %205 = arith.negf %204 : vector<8x128xf32>
    %206 = math.exp %205 : vector<8x128xf32>
    %cst_35 = arith.constant 1.000000e+00 : f32
    %207 = vector.broadcast %cst_35 : f32 to vector<8x128xf32>
    %208 = arith.addf %207, %206 : vector<8x128xf32>
    %209 = arith.divf %207, %208 : vector<8x128xf32>
    %210 = vector.extract_strided_slice %209 {offsets = [0, 0], sizes = [8, 32], strides = [1, 1]} : vector<8x128xf32> to vector<8x32xf32>
    %211 = vector.extract_strided_slice %209 {offsets = [0, 32], sizes = [8, 32], strides = [1, 1]} : vector<8x128xf32> to vector<8x32xf32>
    %212 = vector.extract_strided_slice %204 {offsets = [0, 64], sizes = [8, 32], strides = [1, 1]} : vector<8x128xf32> to vector<8x32xf32>
    %213 = math.tanh %212 : vector<8x32xf32>
    %214 = vector.extract_strided_slice %209 {offsets = [0, 96], sizes = [8, 32], strides = [1, 1]} : vector<8x128xf32> to vector<8x32xf32>
    %215 = arith.mulf %211, %199 : vector<8x32xf32>
    %216 = arith.mulf %210, %213 : vector<8x32xf32>
    %217 = arith.addf %215, %216 : vector<8x32xf32>
    %218 = math.tanh %217 : vector<8x32xf32>
    %219 = arith.mulf %214, %218 : vector<8x32xf32>
    %220 = vector.extract_strided_slice %151 {offsets = [32, 0], sizes = [8, 128], strides = [1, 1]} : vector<64x128xf32> to vector<8x128xf32>
    %cst_36 = arith.constant dense<0.000000e+00> : vector<8x128xf32>
    %221 = tpu.matmul %219, %152, %cst_36 {dimension_numbers = #tpu.dot_dimension_numbers<[1], [0], [0], [1], [0, 0, 1, 1], [], []>} : vector<8x32xf32>, vector<32x128xf32>, vector<8x128xf32> -> vector<8x128xf32>
    %222 = arith.addf %220, %221 : vector<8x128xf32>
    %223 = arith.negf %222 : vector<8x128xf32>
    %224 = math.exp %223 : vector<8x128xf32>
    %cst_37 = arith.constant 1.000000e+00 : f32
    %225 = vector.broadcast %cst_37 : f32 to vector<8x128xf32>
    %226 = arith.addf %225, %224 : vector<8x128xf32>
    %227 = arith.divf %225, %226 : vector<8x128xf32>
    %228 = vector.extract_strided_slice %227 {offsets = [0, 0], sizes = [8, 32], strides = [1, 1]} : vector<8x128xf32> to vector<8x32xf32>
    %229 = vector.extract_strided_slice %227 {offsets = [0, 32], sizes = [8, 32], strides = [1, 1]} : vector<8x128xf32> to vector<8x32xf32>
    %230 = vector.extract_strided_slice %222 {offsets = [0, 64], sizes = [8, 32], strides = [1, 1]} : vector<8x128xf32> to vector<8x32xf32>
    %231 = math.tanh %230 : vector<8x32xf32>
    %232 = vector.extract_strided_slice %227 {offsets = [0, 96], sizes = [8, 32], strides = [1, 1]} : vector<8x128xf32> to vector<8x32xf32>
    %233 = arith.mulf %229, %217 : vector<8x32xf32>
    %234 = arith.mulf %228, %231 : vector<8x32xf32>
    %235 = arith.addf %233, %234 : vector<8x32xf32>
    %236 = math.tanh %235 : vector<8x32xf32>
    %237 = arith.mulf %232, %236 : vector<8x32xf32>
    %238 = vector.extract_strided_slice %151 {offsets = [40, 0], sizes = [8, 128], strides = [1, 1]} : vector<64x128xf32> to vector<8x128xf32>
    %cst_38 = arith.constant dense<0.000000e+00> : vector<8x128xf32>
    %239 = tpu.matmul %237, %152, %cst_38 {dimension_numbers = #tpu.dot_dimension_numbers<[1], [0], [0], [1], [0, 0, 1, 1], [], []>} : vector<8x32xf32>, vector<32x128xf32>, vector<8x128xf32> -> vector<8x128xf32>
    %240 = arith.addf %238, %239 : vector<8x128xf32>
    %241 = arith.negf %240 : vector<8x128xf32>
    %242 = math.exp %241 : vector<8x128xf32>
    %cst_39 = arith.constant 1.000000e+00 : f32
    %243 = vector.broadcast %cst_39 : f32 to vector<8x128xf32>
    %244 = arith.addf %243, %242 : vector<8x128xf32>
    %245 = arith.divf %243, %244 : vector<8x128xf32>
    %246 = vector.extract_strided_slice %245 {offsets = [0, 0], sizes = [8, 32], strides = [1, 1]} : vector<8x128xf32> to vector<8x32xf32>
    %247 = vector.extract_strided_slice %245 {offsets = [0, 32], sizes = [8, 32], strides = [1, 1]} : vector<8x128xf32> to vector<8x32xf32>
    %248 = vector.extract_strided_slice %240 {offsets = [0, 64], sizes = [8, 32], strides = [1, 1]} : vector<8x128xf32> to vector<8x32xf32>
    %249 = math.tanh %248 : vector<8x32xf32>
    %250 = vector.extract_strided_slice %245 {offsets = [0, 96], sizes = [8, 32], strides = [1, 1]} : vector<8x128xf32> to vector<8x32xf32>
    %251 = arith.mulf %247, %235 : vector<8x32xf32>
    %252 = arith.mulf %246, %249 : vector<8x32xf32>
    %253 = arith.addf %251, %252 : vector<8x32xf32>
    %254 = math.tanh %253 : vector<8x32xf32>
    %255 = arith.mulf %250, %254 : vector<8x32xf32>
    %256 = vector.extract_strided_slice %151 {offsets = [48, 0], sizes = [8, 128], strides = [1, 1]} : vector<64x128xf32> to vector<8x128xf32>
    %cst_40 = arith.constant dense<0.000000e+00> : vector<8x128xf32>
    %257 = tpu.matmul %255, %152, %cst_40 {dimension_numbers = #tpu.dot_dimension_numbers<[1], [0], [0], [1], [0, 0, 1, 1], [], []>} : vector<8x32xf32>, vector<32x128xf32>, vector<8x128xf32> -> vector<8x128xf32>
    %258 = arith.addf %256, %257 : vector<8x128xf32>
    %259 = arith.negf %258 : vector<8x128xf32>
    %260 = math.exp %259 : vector<8x128xf32>
    %cst_41 = arith.constant 1.000000e+00 : f32
    %261 = vector.broadcast %cst_41 : f32 to vector<8x128xf32>
    %262 = arith.addf %261, %260 : vector<8x128xf32>
    %263 = arith.divf %261, %262 : vector<8x128xf32>
    %264 = vector.extract_strided_slice %263 {offsets = [0, 0], sizes = [8, 32], strides = [1, 1]} : vector<8x128xf32> to vector<8x32xf32>
    %265 = vector.extract_strided_slice %263 {offsets = [0, 32], sizes = [8, 32], strides = [1, 1]} : vector<8x128xf32> to vector<8x32xf32>
    %266 = vector.extract_strided_slice %258 {offsets = [0, 64], sizes = [8, 32], strides = [1, 1]} : vector<8x128xf32> to vector<8x32xf32>
    %267 = math.tanh %266 : vector<8x32xf32>
    %268 = vector.extract_strided_slice %263 {offsets = [0, 96], sizes = [8, 32], strides = [1, 1]} : vector<8x128xf32> to vector<8x32xf32>
    %269 = arith.mulf %265, %253 : vector<8x32xf32>
    %270 = arith.mulf %264, %267 : vector<8x32xf32>
    %271 = arith.addf %269, %270 : vector<8x32xf32>
    %272 = math.tanh %271 : vector<8x32xf32>
    %273 = arith.mulf %268, %272 : vector<8x32xf32>
    %274 = vector.extract_strided_slice %151 {offsets = [56, 0], sizes = [8, 128], strides = [1, 1]} : vector<64x128xf32> to vector<8x128xf32>
    %cst_42 = arith.constant dense<0.000000e+00> : vector<8x128xf32>
    %275 = tpu.matmul %273, %152, %cst_42 {dimension_numbers = #tpu.dot_dimension_numbers<[1], [0], [0], [1], [0, 0, 1, 1], [], []>} : vector<8x32xf32>, vector<32x128xf32>, vector<8x128xf32> -> vector<8x128xf32>
    %276 = arith.addf %274, %275 : vector<8x128xf32>
    %277 = arith.negf %276 : vector<8x128xf32>
    %278 = math.exp %277 : vector<8x128xf32>
    %cst_43 = arith.constant 1.000000e+00 : f32
    %279 = vector.broadcast %cst_43 : f32 to vector<8x128xf32>
    %280 = arith.addf %279, %278 : vector<8x128xf32>
    %281 = arith.divf %279, %280 : vector<8x128xf32>
    %282 = vector.extract_strided_slice %281 {offsets = [0, 0], sizes = [8, 32], strides = [1, 1]} : vector<8x128xf32> to vector<8x32xf32>
    %283 = vector.extract_strided_slice %281 {offsets = [0, 32], sizes = [8, 32], strides = [1, 1]} : vector<8x128xf32> to vector<8x32xf32>
    %284 = vector.extract_strided_slice %276 {offsets = [0, 64], sizes = [8, 32], strides = [1, 1]} : vector<8x128xf32> to vector<8x32xf32>
    %285 = math.tanh %284 : vector<8x32xf32>
    %286 = vector.extract_strided_slice %281 {offsets = [0, 96], sizes = [8, 32], strides = [1, 1]} : vector<8x128xf32> to vector<8x32xf32>
    %287 = arith.mulf %283, %271 : vector<8x32xf32>
    %288 = arith.mulf %282, %285 : vector<8x32xf32>
    %289 = arith.addf %287, %288 : vector<8x32xf32>
    %290 = math.tanh %289 : vector<8x32xf32>
    %291 = arith.mulf %286, %290 : vector<8x32xf32>
    %292 = tpu.concatenate %165, %183, %201, %219, %237, %255, %273, %291 in 1 : vector<8x32xf32>, vector<8x32xf32>, vector<8x32xf32>, vector<8x32xf32>, vector<8x32xf32>, vector<8x32xf32>, vector<8x32xf32>, vector<8x32xf32> -> vector<8x256xf32>
    %c0_44 = arith.constant 0 : index
    %c0_45 = arith.constant 0 : index
    %293 = vector.load %arg7[%c0_44, %c0_45] : memref<8x256xf32, #tpu.memory_space<vmem>>, vector<8x256xf32>
    tpu.vector_store %arg7[%c0_44, %c0_45], %292 {strides = array<i32>} : memref<8x256xf32, #tpu.memory_space<vmem>>, vector<8x256xf32>,
    return
  }
}

</mosaic_0001>

<llo_original>
// kernel: tpu_custom_call.1
$region0: #{tpu_custom_call.1}
  #allocation0 [shape = 'u32[]', space=smem, size = 0x4, offset = 0x4, fixed_abs, tag = 'smem constant byte address 0x4 - core index']
  #allocation1 [shape = 'u32[144,128]{1,0:T(1,128)}', space=vmem, size = 0x12000, scoped, tag = 'internal scratch']
  %s0 = inlined_call_operand.vmem [shape: f32[64,32], index: 0, kind: input, shape index: {}]
  %s1 = inlined_call_operand.vmem [shape: f32[32,128], index: 1, kind: input, shape index: {}]
  %s2 = inlined_call_operand.vmem [shape: f32[32,128], index: 2, kind: input, shape index: {}]
  %s3 = inlined_call_operand.vmem [shape: f32[1,128], index: 3, kind: input, shape index: {}]
  %s4 = inlined_call_operand.vmem [shape: f32[32,128], index: 4, kind: input, shape index: {}]
  %s5 = inlined_call_operand.hbm [shape: f32[32,128], index: 5, kind: input, shape index: {}]
  %s6 = inlined_call_operand.vmem [shape: f32[1,128], index: 6, kind: input, shape index: {}]
  %s7 = inlined_call_operand.hbm [shape: f32[8,256], index: 7, kind: output, shape index: {}]
  %s8 = sld [smem:[#allocation0]]
  $region42: #{tpu_custom_call.1} parent=0
    _
  %s10 = ssub.s32 1, %s8
  %s11 = scalar_select 0, %s10, %s8
  $region1: #{tpu_custom_call.1} parent=0
    #allocation2 [shape = 'u8[16384]{0}', space=vmem, size = 0x4000, scoped, tag = 'input window, operand 5, single buffered']
    #allocation3 [shape = 's32[1]{0}', space=sflag, size = 0x4, scoped, tag = 'scoped memory for tpu_custom_call.1']
    #allocation4 [shape = 's32[1]{0}', space=sflag, size = 0x4, scoped, tag = 'scoped memory for tpu_custom_call.1']
    #allocation5 [shape = 'u8[8192]{0}', space=vmem, size = 0x2000, scoped, tag = 'output window, operand 0, single buffered']
    %12 = vsyncpa [#allocation3], 0
    %13 = vsyncpa [#allocation4], 0
    // Predicated region
    $region2: #{tpu_custom_call.1} parent=1 // pred_check
      _
    $region3: #{tpu_custom_call.1} parent=1 // pred_check_branch
      %15 = sbr.rel (0) target = $region5
    $region4: #{tpu_custom_call.1} parent=1 // pred_region
      _
    $region5: #{tpu_custom_call.1} parent=1 // pred_fallthru
      _
    // Predicated region
    $region6: #{tpu_custom_call.1} parent=1 // pred_check
      _
    $region7: #{tpu_custom_call.1} parent=1 // pred_check_branch
      %17 = sbr.rel (0) target = $region9
    $region8: #{tpu_custom_call.1} parent=1 // pred_region
      _
    $region9: #{tpu_custom_call.1} parent=1 // pred_fallthru
      _
    // Predicated region
    $region10: #{tpu_custom_call.1} parent=1 // pred_check
      _
    $region11: #{tpu_custom_call.1} parent=1 // pred_check_branch
      %19 = sbr.rel (0) target = $region13
    $region12: #{tpu_custom_call.1} parent=1 // pred_region
      _
    $region13: #{tpu_custom_call.1} parent=1 // pred_fallthru
      _
    // Predicated region
    $region14: #{tpu_custom_call.1} parent=1 // pred_check
      _
    $region15: #{tpu_custom_call.1} parent=1 // pred_check_branch
      %21 = sbr.rel (0) target = $region17
    $region16: #{tpu_custom_call.1} parent=1 // pred_region
      _
    $region17: #{tpu_custom_call.1} parent=1 // pred_fallthru
      _
    // Predicated region
    $region18: #{tpu_custom_call.1} parent=1 // pred_check
      _
    $region19: #{tpu_custom_call.1} parent=1 // pred_check_branch
      %23 = sbr.rel (0) target = $region21
    $region20: #{tpu_custom_call.1} parent=1 // pred_region
      _
    $region21: #{tpu_custom_call.1} parent=1 // pred_fallthru
      _
    // Predicated region
    $region22: #{tpu_custom_call.1} parent=1 // pred_check
      _
    $region23: #{tpu_custom_call.1} parent=1 // pred_check_branch
      %25 = sbr.rel (0) target = $region25
    $region24: #{tpu_custom_call.1} parent=1 // pred_region
      %s27 = ssub.s32 512, 512
      %28 = vsyncadd [#allocation3], %s27
      %s29 = sshll.u32 [#allocation2], 4
      %s30 = int_to_ptr.vmem [resolvable:$true] %s29
      %35 = dma.hbm_to_vmem [thread:$0]  %s5, 512, %s30, [#allocation3], 128, 128, 8
    $region25: #{tpu_custom_call.1} parent=1 // pred_fallthru
      _
    // Predicated region
    $region26: #{tpu_custom_call.1} parent=1 // pred_check
      _
    $region27: #{tpu_custom_call.1} parent=1 // pred_check_branch
      %37 = sbr.rel (0) target = $region29
    $region28: #{tpu_custom_call.1} parent=1 // pred_region
      _
    $region29: #{tpu_custom_call.1} parent=1 // pred_fallthru
      _
    // Predicated region
    $region30: #{tpu_custom_call.1} parent=1 // pred_check
      _
    $region31: #{tpu_custom_call.1} parent=1 // pred_check_branch
      %39 = sbr.rel (0) target = $region33
    $region32: #{tpu_custom_call.1} parent=1 // pred_region
      %40 = dma.done [#allocation3], 512
    $region33: #{tpu_custom_call.1} parent=1 // pred_fallthru
      _
    %v41 = vld [vmem:[%s0] sm:$0xff]
    %v42 = vld [vmem:[%s0 + $0x8] sm:$0xff]
    %v43 = vld [vmem:[%s0 + $0x10] sm:$0xff]
    %v44 = vld [vmem:[%s0 + $0x18] sm:$0xff]
    %v45 = vld [vmem:[%s0 + $0x20] sm:$0xff]
    %v46 = vld [vmem:[%s0 + $0x28] sm:$0xff]
    %v47 = vld [vmem:[%s0 + $0x30] sm:$0xff]
    %v48 = vld [vmem:[%s0 + $0x38] sm:$0xff]
    %v49 = vld [vmem:[%s1] sm:$0xff]
    %v50 = vld [vmem:[%s1 + $0x8] sm:$0xff]
    %v51 = vld [vmem:[%s1 + $0x10] sm:$0xff]
    %v52 = vld [vmem:[%s1 + $0x18] sm:$0xff]
    %v53 = vld [vmem:[%s3] sm:$0x1]
    %v55 = vlaneseq
    %v56 = vshrl.u32 %v55, 7
    %v57 = vsub.s32 0, %v56
    %v58 = vrot.slane %v53, %v57
    %vm60 = vcmask 261120
    %v62 = vsel %vm60, %v41, 0
    %v65 = vsel %vm60, %v42, 0
    %v68 = vsel %vm60, %v43, 0
    %v71 = vsel %vm60, %v44, 0
    %v74 = vsel %vm60, %v45, 0
    %v77 = vsel %vm60, %v46, 0
    %v80 = vsel %vm60, %v47, 0
    %v83 = vsel %vm60, %v48, 0
    %85 = vmatprep.subr.mxu0 0.0
    %86 = vmatpush1.msra.mxu0 %v49
    %87 = vmatprep.subr.mxu0 0.0
    %88 = vmatpush1.msra.mxu0 %v50
    %89 = vmatprep.subr.mxu0 0.0
    %90 = vmatpush1.msra.mxu0 %v51
    %91 = vmatprep.subr.mxu0 0.0
    %92 = vmatpush1.msra.mxu0 %v52
    %93 = vmatprep.subr.mxu0 0.0
    %94 = vmatpush1.msra.mxu0 0.0
    %95 = vmatprep.subr.mxu0 0.0
    %96 = vmatpush1.msra.mxu0 0.0
    %97 = vmatprep.subr.mxu0 0.0
    %98 = vmatpush1.msra.mxu0 0.0
    %99 = vmatprep.subr.mxu0 0.0
    %100 = vmatpush1.msra.mxu0 0.0
    %101 = vmatprep.subr.mxu0 0.0
    %102 = vmatpush1.msra.mxu0 0.0
    %103 = vmatprep.subr.mxu0 0.0
    %104 = vmatpush1.msra.mxu0 0.0
    %105 = vmatprep.subr.mxu0 0.0
    %106 = vmatpush1.msra.mxu0 0.0
    %107 = vmatprep.subr.mxu0 0.0
    %108 = vmatpush1.msra.mxu0 0.0
    %109 = vmatprep.subr.mxu0 0.0
    %110 = vmatpush1.msra.mxu0 0.0
    %111 = vmatprep.subr.mxu0 0.0
    %112 = vmatpush1.msra.mxu0 0.0
    %113 = vmatprep.subr.mxu0 0.0
    %114 = vmatpush1.msra.mxu0 0.0
    %115 = vmatprep.subr.mxu0 0.0
    %116 = vmatpush1.msra.mxu0 0.0
    %117 = vmatprep.subr.mxu0 0.0
    %118 = vmatpush1.msra.mxu0 0.0
    %119 = vmatprep.subr.mxu0 0.0
    %120 = vmatpush1.msra.mxu0 0.0
    %121 = vmatprep.subr.mxu0 0.0
    %122 = vmatpush1.msra.mxu0 0.0
    %123 = vmatprep.subr.mxu0 0.0
    %124 = vmatpush1.msra.mxu0 0.0
    %125 = vmatprep.subr.mxu0 0.0
    %126 = vmatpush1.msra.mxu0 0.0
    %127 = vmatprep.subr.mxu0 0.0
    %128 = vmatpush1.msra.mxu0 0.0
    %129 = vmatprep.subr.mxu0 0.0
    %130 = vmatpush1.msra.mxu0 0.0
    %131 = vmatprep.subr.mxu0 0.0
    %132 = vmatpush1.msra.mxu0 0.0
    %133 = vmatprep.subr.mxu0 0.0
    %134 = vmatpush1.msra.mxu0 0.0
    %135 = vmatprep.subr.mxu0 0.0
    %136 = vmatpush1.msra.mxu0 0.0
    %137 = vmatprep.subr.mxu0 0.0
    %138 = vmatpush1.msra.mxu0 0.0
    %139 = vmatprep.subr.mxu0 0.0
    %140 = vmatpush1.msra.mxu0 0.0
    %141 = vmatprep.subr.mxu0 0.0
    %142 = vmatpush1.msra.mxu0 0.0
    %143 = vmatprep.subr.mxu0 0.0
    %144 = vmatpush1.msra.mxu0 0.0
    %145 = vmatprep.subr.mxu0 0.0
    %146 = vmatpush1.msra.mxu0 0.0
    %147 = vmatprep.subr.mxu0 0.0
    %148 = vmatpush1.msra.mxu0 0.0
    %149 = vmatprep.mubr.f32.mxu0 0.0
    %150 = vmatmul.mubr.f32.gmra.mrb[0].mxu0 %v62
    %v151 = vpop.f32.mrb[0].mxu0
    %v152 = vadd.f32 %v58, %v151
    %v153 = vpop.f32.mrb[0].mxu0
    %154 = vmatprep.mubr.f32.mxu0 0.0
    %155 = vmatmul.mubr.f32.gmra.mrb[0].mxu0 %v65
    %v156 = vpop.f32.mrb[0].mxu0
    %v157 = vadd.f32 %v58, %v156
    %v158 = vpop.f32.mrb[0].mxu0
    %159 = vmatprep.mubr.f32.mxu0 0.0
    %160 = vmatmul.mubr.f32.gmra.mrb[0].mxu0 %v68
    %v161 = vpop.f32.mrb[0].mxu0
    %v162 = vadd.f32 %v58, %v161
    %v163 = vpop.f32.mrb[0].mxu0
    %164 = vmatprep.mubr.f32.mxu0 0.0
    %165 = vmatmul.mubr.f32.gmra.mrb[0].mxu0 %v71
    %v166 = vpop.f32.mrb[0].mxu0
    %v167 = vadd.f32 %v58, %v166
    %v168 = vpop.f32.mrb[0].mxu0
    %169 = vmatprep.mubr.f32.mxu0 0.0
    %170 = vmatmul.mubr.f32.gmra.mrb[0].mxu0 %v74
    %v171 = vpop.f32.mrb[0].mxu0
    %v172 = vadd.f32 %v58, %v171
    %v173 = vpop.f32.mrb[0].mxu0
    %174 = vmatprep.mubr.f32.mxu0 0.0
    %175 = vmatmul.mubr.f32.gmra.mrb[0].mxu0 %v77
    %v176 = vpop.f32.mrb[0].mxu0
    %v177 = vadd.f32 %v58, %v176
    %v178 = vpop.f32.mrb[0].mxu0
    %179 = vmatprep.mubr.f32.mxu0 0.0
    %180 = vmatmul.mubr.f32.gmra.mrb[0].mxu0 %v80
    %v181 = vpop.f32.mrb[0].mxu0
    %v182 = vadd.f32 %v58, %v181
    %v183 = vpop.f32.mrb[0].mxu0
    %184 = vmatprep.mubr.f32.mxu0 0.0
    %185 = vmatmul.mubr.f32.gmra.mrb[0].mxu0 %v83
    %v186 = vpop.f32.mrb[0].mxu0
    %v187 = vadd.f32 %v58, %v186
    %v188 = vpop.f32.mrb[0].mxu0
    %189 = vdwg.mxu0
    %v190 = vld [vmem:[%s2] sm:$0xff]
    %v191 = vld [vmem:[%s2 + $0x8] sm:$0xff]
    %v192 = vld [vmem:[%s2 + $0x10] sm:$0xff]
    %v193 = vld [vmem:[%s2 + $0x18] sm:$0xff]
    %v194 = vxor.u32 %v152, 2147483648
    %v195 = vmul.f32 %v194, 1.442695
    %v196 = vpow.pop %v195
    %v197 = vadd.f32 %v196, 1.0
    %v198 = vrcp.pop %v197
    %v199 = vmul.f32 1.0, %v198
    %v200 = vtanh.pop %v152
    %202 = vrot.lane.b32.xlu0 %v200, 64
    %v203 = vpop.permute.xlu0 %202
    %v205 = vmul.f32 %v199, %v203
    %v206 = vtanh.pop %v205
    %208 = vrot.lane.b32.xlu0 %v206, 96
    %v209 = vpop.permute.xlu0 %208
    %v211 = vmul.f32 %v199, %v209
    %213 = vrot.lane.b32.xlu0 %v211, 32
    %v214 = vpop.permute.xlu0 %213
    %v215 = vsel %vm60, %v214, 0
    %217 = vmatprep.subr.mxu0 0.0
    %218 = vmatpush1.msra.mxu0 %v190
    %219 = vmatprep.subr.mxu0 0.0
    %220 = vmatpush1.msra.mxu0 %v191
    %221 = vmatprep.subr.mxu0 0.0
    %222 = vmatpush1.msra.mxu0 %v192
    %223 = vmatprep.subr.mxu0 0.0
    %224 = vmatpush1.msra.mxu0 %v193
    %225 = vmatprep.subr.mxu0 0.0
    %226 = vmatpush1.msra.mxu0 0.0
    %227 = vmatprep.subr.mxu0 0.0
    %228 = vmatpush1.msra.mxu0 0.0
    %229 = vmatprep.subr.mxu0 0.0
    %230 = vmatpush1.msra.mxu0 0.0
    %231 = vmatprep.subr.mxu0 0.0
    %232 = vmatpush1.msra.mxu0 0.0
    %233 = vmatprep.subr.mxu0 0.0
    %234 = vmatpush1.msra.mxu0 0.0
    %235 = vmatprep.subr.mxu0 0.0
    %236 = vmatpush1.msra.mxu0 0.0
    %237 = vmatprep.subr.mxu0 0.0
    %238 = vmatpush1.msra.mxu0 0.0
    %239 = vmatprep.subr.mxu0 0.0
    %240 = vmatpush1.msra.mxu0 0.0
    %241 = vmatprep.subr.mxu0 0.0
    %242 = vmatpush1.msra.mxu0 0.0
    %243 = vmatprep.subr.mxu0 0.0
    %244 = vmatpush1.msra.mxu0 0.0
    %245 = vmatprep.subr.mxu0 0.0
    %246 = vmatpush1.msra.mxu0 0.0
    %247 = vmatprep.subr.mxu0 0.0
    %248 = vmatpush1.msra.mxu0 0.0
    %249 = vmatprep.subr.mxu0 0.0
    %250 = vmatpush1.msra.mxu0 0.0
    %251 = vmatprep.subr.mxu0 0.0
    %252 = vmatpush1.msra.mxu0 0.0
    %253 = vmatprep.subr.mxu0 0.0
    %254 = vmatpush1.msra.mxu0 0.0
    %255 = vmatprep.subr.mxu0 0.0
    %256 = vmatpush1.msra.mxu0 0.0
    %257 = vmatprep.subr.mxu0 0.0
    %258 = vmatpush1.msra.mxu0 0.0
    %259 = vmatprep.subr.mxu0 0.0
    %260 = vmatpush1.msra.mxu0 0.0
    %261 = vmatprep.subr.mxu0 0.0
    %262 = vmatpush1.msra.mxu0 0.0
    %263 = vmatprep.subr.mxu0 0.0
    %264 = vmatpush1.msra.mxu0 0.0
    %265 = vmatprep.subr.mxu0 0.0
    %266 = vmatpush1.msra.mxu0 0.0
    %267 = vmatprep.subr.mxu0 0.0
    %268 = vmatpush1.msra.mxu0 0.0
    %269 = vmatprep.subr.mxu0 0.0
    %270 = vmatpush1.msra.mxu0 0.0
    %271 = vmatprep.subr.mxu0 0.0
    %272 = vmatpush1.msra.mxu0 0.0
    %273 = vmatprep.subr.mxu0 0.0
    %274 = vmatpush1.msra.mxu0 0.0
    %275 = vmatprep.subr.mxu0 0.0
    %276 = vmatpush1.msra.mxu0 0.0
    %277 = vmatprep.subr.mxu0 0.0
    %278 = vmatpush1.msra.mxu0 0.0
    %279 = vmatprep.subr.mxu0 0.0
    %280 = vmatpush1.msra.mxu0 0.0
    %281 = vmatprep.mubr.f32.mxu0 0.0
    %282 = vmatmul.mubr.f32.gmra.mrb[0].mxu0 %v215
    %v283 = vpop.f32.mrb[0].mxu0
    %v284 = vadd.f32 0.0, %v283
    %v285 = vpop.f32.mrb[0].mxu0
    %286 = vdwg.mxu0
    %v287 = vadd.f32 %v157, %v284
    %v288 = vxor.u32 %v287, 2147483648
    %v289 = vmul.f32 %v288, 1.442695
    %v290 = vpow.pop %v289
    %v291 = vadd.f32 %v290, 1.0
    %v292 = vrcp.pop %v291
    %v293 = vmul.f32 1.0, %v292
    %v294 = vtanh.pop %v287
    %296 = vrot.lane.b32.xlu0 %v205, 32
    %v297 = vpop.permute.xlu0 %296
    %v299 = vmul.f32 %v293, %v297
    %301 = vrot.lane.b32.xlu0 %v294, 64
    %v302 = vpop.permute.xlu0 %301
    %v304 = vmul.f32 %v293, %v302
    %306 = vrot.lane.b32.xlu0 %v304, 32
    %v307 = vpop.permute.xlu0 %306
    %v309 = vadd.f32 %v299, %v307
    %v310 = vtanh.pop %v309
    %312 = vrot.lane.b32.xlu0 %v310, 64
    %v313 = vpop.permute.xlu0 %312
    %v315 = vmul.f32 %v293, %v313
    %317 = vrot.lane.b32.xlu0 %v315, 32
    %v318 = vpop.permute.xlu0 %317
    %v319 = vsel %vm60, %v318, 0
    %321 = vmatprep.subr.mxu0 0.0
    %322 = vmatpush1.msra.mxu0 %v190
    %323 = vmatprep.subr.mxu0 0.0
    %324 = vmatpush1.msra.mxu0 %v191
    %325 = vmatprep.subr.mxu0 0.0
    %326 = vmatpush1.msra.mxu0 %v192
    %327 = vmatprep.subr.mxu0 0.0
    %328 = vmatpush1.msra.mxu0 %v193
    %329 = vmatprep.subr.mxu0 0.0
    %330 = vmatpush1.msra.mxu0 0.0
    %331 = vmatprep.subr.mxu0 0.0
    %332 = vmatpush1.msra.mxu0 0.0
    %333 = vmatprep.subr.mxu0 0.0
    %334 = vmatpush1.msra.mxu0 0.0
    %335 = vmatprep.subr.mxu0 0.0
    %336 = vmatpush1.msra.mxu0 0.0
    %337 = vmatprep.subr.mxu0 0.0
    %338 = vmatpush1.msra.mxu0 0.0
    %339 = vmatprep.subr.mxu0 0.0
    %340 = vmatpush1.msra.mxu0 0.0
    %341 = vmatprep.subr.mxu0 0.0
    %342 = vmatpush1.msra.mxu0 0.0
    %343 = vmatprep.subr.mxu0 0.0
    %344 = vmatpush1.msra.mxu0 0.0
    %345 = vmatprep.subr.mxu0 0.0
    %346 = vmatpush1.msra.mxu0 0.0
    %347 = vmatprep.subr.mxu0 0.0
    %348 = vmatpush1.msra.mxu0 0.0
    %349 = vmatprep.subr.mxu0 0.0
    %350 = vmatpush1.msra.mxu0 0.0
    %351 = vmatprep.subr.mxu0 0.0
    %352 = vmatpush1.msra.mxu0 0.0
    %353 = vmatprep.subr.mxu0 0.0
    %354 = vmatpush1.msra.mxu0 0.0
    %355 = vmatprep.subr.mxu0 0.0
    %356 = vmatpush1.msra.mxu0 0.0
    %357 = vmatprep.subr.mxu0 0.0
    %358 = vmatpush1.msra.mxu0 0.0
    %359 = vmatprep.subr.mxu0 0.0
    %360 = vmatpush1.msra.mxu0 0.0
    %361 = vmatprep.subr.mxu0 0.0
    %362 = vmatpush1.msra.mxu0 0.0
    %363 = vmatprep.subr.mxu0 0.0
    %364 = vmatpush1.msra.mxu0 0.0
    %365 = vmatprep.subr.mxu0 0.0
    %366 = vmatpush1.msra.mxu0 0.0
    %367 = vmatprep.subr.mxu0 0.0
    %368 = vmatpush1.msra.mxu0 0.0
    %369 = vmatprep.subr.mxu0 0.0
    %370 = vmatpush1.msra.mxu0 0.0
    %371 = vmatprep.subr.mxu0 0.0
    %372 = vmatpush1.msra.mxu0 0.0
    %373 = vmatprep.subr.mxu0 0.0
    %374 = vmatpush1.msra.mxu0 0.0
    %375 = vmatprep.subr.mxu0 0.0
    %376 = vmatpush1.msra.mxu0 0.0
    %377 = vmatprep.subr.mxu0 0.0
    %378 = vmatpush1.msra.mxu0 0.0
    %379 = vmatprep.subr.mxu0 0.0
    %380 = vmatpush1.msra.mxu0 0.0
    %381 = vmatprep.subr.mxu0 0.0
    %382 = vmatpush1.msra.mxu0 0.0
    %383 = vmatprep.subr.mxu0 0.0
    %384 = vmatpush1.msra.mxu0 0.0
    %385 = vmatprep.mubr.f32.mxu0 0.0
    %386 = vmatmul.mubr.f32.gmra.mrb[0].mxu0 %v319
    %v387 = vpop.f32.mrb[0].mxu0
    %v388 = vadd.f32 0.0, %v387
    %v389 = vpop.f32.mrb[0].mxu0
    %390 = vdwg.mxu0
    %v391 = vadd.f32 %v162, %v388
    %v392 = vxor.u32 %v391, 2147483648
    %v393 = vmul.f32 %v392, 1.442695
    %v394 = vpow.pop %v393
    %v395 = vadd.f32 %v394, 1.0
    %v396 = vrcp.pop %v395
    %v397 = vmul.f32 1.0, %v396
    %v398 = vtanh.pop %v391
    %v399 = vmul.f32 %v397, %v309
    %401 = vrot.lane.b32.xlu0 %v398, 64
    %v402 = vpop.permute.xlu0 %401
    %v404 = vmul.f32 %v397, %v402
    %406 = vrot.lane.b32.xlu0 %v404, 32
    %v407 = vpop.permute.xlu0 %406
    %v409 = vadd.f32 %v399, %v407
    %v410 = vtanh.pop %v409
    %412 = vrot.lane.b32.xlu0 %v410, 64
    %v413 = vpop.permute.xlu0 %412
    %v415 = vmul.f32 %v397, %v413
    %417 = vrot.lane.b32.xlu0 %v415, 32
    %v418 = vpop.permute.xlu0 %417
    %v419 = vsel %vm60, %v418, 0
    %421 = vmatprep.subr.mxu0 0.0
    %422 = vmatpush1.msra.mxu0 %v190
    %423 = vmatprep.subr.mxu0 0.0
    %424 = vmatpush1.msra.mxu0 %v191
    %425 = vmatprep.subr.mxu0 0.0
    %426 = vmatpush1.msra.mxu0 %v192
    %427 = vmatprep.subr.mxu0 0.0
    %428 = vmatpush1.msra.mxu0 %v193
    %429 = vmatprep.subr.mxu0 0.0
    %430 = vmatpush1.msra.mxu0 0.0
    %431 = vmatprep.subr.mxu0 0.0
    %432 = vmatpush1.msra.mxu0 0.0
    %433 = vmatprep.subr.mxu0 0.0
    %434 = vmatpush1.msra.mxu0 0.0
    %435 = vmatprep.subr.mxu0 0.0
    %436 = vmatpush1.msra.mxu0 0.0
    %437 = vmatprep.subr.mxu0 0.0
    %438 = vmatpush1.msra.mxu0 0.0
    %439 = vmatprep.subr.mxu0 0.0
    %440 = vmatpush1.msra.mxu0 0.0
    %441 = vmatprep.subr.mxu0 0.0
    %442 = vmatpush1.msra.mxu0 0.0
    %443 = vmatprep.subr.mxu0 0.0
    %444 = vmatpush1.msra.mxu0 0.0
    %445 = vmatprep.subr.mxu0 0.0
    %446 = vmatpush1.msra.mxu0 0.0
    %447 = vmatprep.subr.mxu0 0.0
    %448 = vmatpush1.msra.mxu0 0.0
    %449 = vmatprep.subr.mxu0 0.0
    %450 = vmatpush1.msra.mxu0 0.0
    %451 = vmatprep.subr.mxu0 0.0
    %452 = vmatpush1.msra.mxu0 0.0
    %453 = vmatprep.subr.mxu0 0.0
    %454 = vmatpush1.msra.mxu0 0.0
    %455 = vmatprep.subr.mxu0 0.0
    %456 = vmatpush1.msra.mxu0 0.0
    %457 = vmatprep.subr.mxu0 0.0
    %458 = vmatpush1.msra.mxu0 0.0
    %459 = vmatprep.subr.mxu0 0.0
    %460 = vmatpush1.msra.mxu0 0.0
    %461 = vmatprep.subr.mxu0 0.0
    %462 = vmatpush1.msra.mxu0 0.0
    %463 = vmatprep.subr.mxu0 0.0
    %464 = vmatpush1.msra.mxu0 0.0
    %465 = vmatprep.subr.mxu0 0.0
    %466 = vmatpush1.msra.mxu0 0.0
    %467 = vmatprep.subr.mxu0 0.0
    %468 = vmatpush1.msra.mxu0 0.0
    %469 = vmatprep.subr.mxu0 0.0
    %470 = vmatpush1.msra.mxu0 0.0
    %471 = vmatprep.subr.mxu0 0.0
    %472 = vmatpush1.msra.mxu0 0.0
    %473 = vmatprep.subr.mxu0 0.0
    %474 = vmatpush1.msra.mxu0 0.0
    %475 = vmatprep.subr.mxu0 0.0
    %476 = vmatpush1.msra.mxu0 0.0
    %477 = vmatprep.subr.mxu0 0.0
    %478 = vmatpush1.msra.mxu0 0.0
    %479 = vmatprep.subr.mxu0 0.0
    %480 = vmatpush1.msra.mxu0 0.0
    %481 = vmatprep.subr.mxu0 0.0
    %482 = vmatpush1.msra.mxu0 0.0
    %483 = vmatprep.subr.mxu0 0.0
    %484 = vmatpush1.msra.mxu0 0.0
    %485 = vmatprep.mubr.f32.mxu0 0.0
    %486 = vmatmul.mubr.f32.gmra.mrb[0].mxu0 %v419
    %v487 = vpop.f32.mrb[0].mxu0
    %v488 = vadd.f32 0.0, %v487
    %v489 = vpop.f32.mrb[0].mxu0
    %490 = vdwg.mxu0
    %v491 = vadd.f32 %v167, %v488
    %v492 = vxor.u32 %v491, 2147483648
    %v493 = vmul.f32 %v492, 1.442695
    %v494 = vpow.pop %v493
    %v495 = vadd.f32 %v494, 1.0
    %v496 = vrcp.pop %v495
    %v497 = vmul.f32 1.0, %v496
    %v498 = vtanh.pop %v491
    %v499 = vmul.f32 %v497, %v409
    %501 = vrot.lane.b32.xlu0 %v498, 64
    %v502 = vpop.permute.xlu0 %501
    %v504 = vmul.f32 %v497, %v502
    %506 = vrot.lane.b32.xlu0 %v504, 32
    %v507 = vpop.permute.xlu0 %506
    %v509 = vadd.f32 %v499, %v507
    %v510 = vtanh.pop %v509
    %512 = vrot.lane.b32.xlu0 %v510, 64
    %v513 = vpop.permute.xlu0 %512
    %v515 = vmul.f32 %v497, %v513
    %517 = vrot.lane.b32.xlu0 %v515, 32
    %v518 = vpop.permute.xlu0 %517
    %v519 = vsel %vm60, %v518, 0
    %521 = vmatprep.subr.mxu0 0.0
    %522 = vmatpush1.msra.mxu0 %v190
    %523 = vmatprep.subr.mxu0 0.0
    %524 = vmatpush1.msra.mxu0 %v191
    %525 = vmatprep.subr.mxu0 0.0
    %526 = vmatpush1.msra.mxu0 %v192
    %527 = vmatprep.subr.mxu0 0.0
    %528 = vmatpush1.msra.mxu0 %v193
    %529 = vmatprep.subr.mxu0 0.0
    %530 = vmatpush1.msra.mxu0 0.0
    %531 = vmatprep.subr.mxu0 0.0
    %532 = vmatpush1.msra.mxu0 0.0
    %533 = vmatprep.subr.mxu0 0.0
    %534 = vmatpush1.msra.mxu0 0.0
    %535 = vmatprep.subr.mxu0 0.0
    %536 = vmatpush1.msra.mxu0 0.0
    %537 = vmatprep.subr.mxu0 0.0
    %538 = vmatpush1.msra.mxu0 0.0
    %539 = vmatprep.subr.mxu0 0.0
    %540 = vmatpush1.msra.mxu0 0.0
    %541 = vmatprep.subr.mxu0 0.0
    %542 = vmatpush1.msra.mxu0 0.0
    %543 = vmatprep.subr.mxu0 0.0
    %544 = vmatpush1.msra.mxu0 0.0
    %545 = vmatprep.subr.mxu0 0.0
    %546 = vmatpush1.msra.mxu0 0.0
    %547 = vmatprep.subr.mxu0 0.0
    %548 = vmatpush1.msra.mxu0 0.0
    %549 = vmatprep.subr.mxu0 0.0
    %550 = vmatpush1.msra.mxu0 0.0
    %551 = vmatprep.subr.mxu0 0.0
    %552 = vmatpush1.msra.mxu0 0.0
    %553 = vmatprep.subr.mxu0 0.0
    %554 = vmatpush1.msra.mxu0 0.0
    %555 = vmatprep.subr.mxu0 0.0
    %556 = vmatpush1.msra.mxu0 0.0
    %557 = vmatprep.subr.mxu0 0.0
    %558 = vmatpush1.msra.mxu0 0.0
    %559 = vmatprep.subr.mxu0 0.0
    %560 = vmatpush1.msra.mxu0 0.0
    %561 = vmatprep.subr.mxu0 0.0
    %562 = vmatpush1.msra.mxu0 0.0
    %563 = vmatprep.subr.mxu0 0.0
    %564 = vmatpush1.msra.mxu0 0.0
    %565 = vmatprep.subr.mxu0 0.0
    %566 = vmatpush1.msra.mxu0 0.0
    %567 = vmatprep.subr.mxu0 0.0
    %568 = vmatpush1.msra.mxu0 0.0
    %569 = vmatprep.subr.mxu0 0.0
    %570 = vmatpush1.msra.mxu0 0.0
    %571 = vmatprep.subr.mxu0 0.0
    %572 = vmatpush1.msra.mxu0 0.0
    %573 = vmatprep.subr.mxu0 0.0
    %574 = vmatpush1.msra.mxu0 0.0
    %575 = vmatprep.subr.mxu0 0.0
    %576 = vmatpush1.msra.mxu0 0.0
    %577 = vmatprep.subr.mxu0 0.0
    %578 = vmatpush1.msra.mxu0 0.0
    %579 = vmatprep.subr.mxu0 0.0
    %580 = vmatpush1.msra.mxu0 0.0
    %581 = vmatprep.subr.mxu0 0.0
    %582 = vmatpush1.msra.mxu0 0.0
    %583 = vmatprep.subr.mxu0 0.0
    %584 = vmatpush1.msra.mxu0 0.0
    %585 = vmatprep.mubr.f32.mxu0 0.0
    %586 = vmatmul.mubr.f32.gmra.mrb[0].mxu0 %v519
    %v587 = vpop.f32.mrb[0].mxu0
    %v588 = vadd.f32 0.0, %v587
    %v589 = vpop.f32.mrb[0].mxu0
    %590 = vdwg.mxu0
    %v591 = vadd.f32 %v172, %v588
    %v592 = vxor.u32 %v591, 2147483648
    %v593 = vmul.f32 %v592, 1.442695
    %v594 = vpow.pop %v593
    %v595 = vadd.f32 %v594, 1.0
    %v596 = vrcp.pop %v595
    %v597 = vmul.f32 1.0, %v596
    %v598 = vtanh.pop %v591
    %v599 = vmul.f32 %v597, %v509
    %601 = vrot.lane.b32.xlu0 %v598, 64
    %v602 = vpop.permute.xlu0 %601
    %v604 = vmul.f32 %v597, %v602
    %606 = vrot.lane.b32.xlu0 %v604, 32
    %v607 = vpop.permute.xlu0 %606
    %v609 = vadd.f32 %v599, %v607
    %v610 = vtanh.pop %v609
    %612 = vrot.lane.b32.xlu0 %v610, 64
    %v613 = vpop.permute.xlu0 %612
    %v615 = vmul.f32 %v597, %v613
    %617 = vrot.lane.b32.xlu0 %v615, 32
    %v618 = vpop.permute.xlu0 %617
    %v619 = vsel %vm60, %v618, 0
    %621 = vmatprep.subr.mxu0 0.0
    %622 = vmatpush1.msra.mxu0 %v190
    %623 = vmatprep.subr.mxu0 0.0
    %624 = vmatpush1.msra.mxu0 %v191
    %625 = vmatprep.subr.mxu0 0.0
    %626 = vmatpush1.msra.mxu0 %v192
    %627 = vmatprep.subr.mxu0 0.0
    %628 = vmatpush1.msra.mxu0 %v193
    %629 = vmatprep.subr.mxu0 0.0
    %630 = vmatpush1.msra.mxu0 0.0
    %631 = vmatprep.subr.mxu0 0.0
    %632 = vmatpush1.msra.mxu0 0.0
    %633 = vmatprep.subr.mxu0 0.0
    %634 = vmatpush1.msra.mxu0 0.0
    %635 = vmatprep.subr.mxu0 0.0
    %636 = vmatpush1.msra.mxu0 0.0
    %637 = vmatprep.subr.mxu0 0.0
    %638 = vmatpush1.msra.mxu0 0.0
    %639 = vmatprep.subr.mxu0 0.0
    %640 = vmatpush1.msra.mxu0 0.0
    %641 = vmatprep.subr.mxu0 0.0
    %642 = vmatpush1.msra.mxu0 0.0
    %643 = vmatprep.subr.mxu0 0.0
    %644 = vmatpush1.msra.mxu0 0.0
    %645 = vmatprep.subr.mxu0 0.0
    %646 = vmatpush1.msra.mxu0 0.0
    %647 = vmatprep.subr.mxu0 0.0
    %648 = vmatpush1.msra.mxu0 0.0
    %649 = vmatprep.subr.mxu0 0.0
    %650 = vmatpush1.msra.mxu0 0.0
    %651 = vmatprep.subr.mxu0 0.0
    %652 = vmatpush1.msra.mxu0 0.0
    %653 = vmatprep.subr.mxu0 0.0
    %654 = vmatpush1.msra.mxu0 0.0
    %655 = vmatprep.subr.mxu0 0.0
    %656 = vmatpush1.msra.mxu0 0.0
    %657 = vmatprep.subr.mxu0 0.0
    %658 = vmatpush1.msra.mxu0 0.0
    %659 = vmatprep.subr.mxu0 0.0
    %660 = vmatpush1.msra.mxu0 0.0
    %661 = vmatprep.subr.mxu0 0.0
    %662 = vmatpush1.msra.mxu0 0.0
    %663 = vmatprep.subr.mxu0 0.0
    %664 = vmatpush1.msra.mxu0 0.0
    %665 = vmatprep.subr.mxu0 0.0
    %666 = vmatpush1.msra.mxu0 0.0
    %667 = vmatprep.subr.mxu0 0.0
    %668 = vmatpush1.msra.mxu0 0.0
    %669 = vmatprep.subr.mxu0 0.0
    %670 = vmatpush1.msra.mxu0 0.0
    %671 = vmatprep.subr.mxu0 0.0
    %672 = vmatpush1.msra.mxu0 0.0
    %673 = vmatprep.subr.mxu0 0.0
    %674 = vmatpush1.msra.mxu0 0.0
    %675 = vmatprep.subr.mxu0 0.0
    %676 = vmatpush1.msra.mxu0 0.0
    %677 = vmatprep.subr.mxu0 0.0
    %678 = vmatpush1.msra.mxu0 0.0
    %679 = vmatprep.subr.mxu0 0.0
    %680 = vmatpush1.msra.mxu0 0.0
    %681 = vmatprep.subr.mxu0 0.0
    %682 = vmatpush1.msra.mxu0 0.0
    %683 = vmatprep.subr.mxu0 0.0
    %684 = vmatpush1.msra.mxu0 0.0
    %685 = vmatprep.mubr.f32.mxu0 0.0
    %686 = vmatmul.mubr.f32.gmra.mrb[0].mxu0 %v619
    %v687 = vpop.f32.mrb[0].mxu0
    %v688 = vadd.f32 0.0, %v687
    %v689 = vpop.f32.mrb[0].mxu0
    %690 = vdwg.mxu0
    %v691 = vadd.f32 %v177, %v688
    %v692 = vxor.u32 %v691, 2147483648
    %v693 = vmul.f32 %v692, 1.442695
    %v694 = vpow.pop %v693
    %v695 = vadd.f32 %v694, 1.0
    %v696 = vrcp.pop %v695
    %v697 = vmul.f32 1.0, %v696
    %v698 = vtanh.pop %v691
    %v699 = vmul.f32 %v697, %v609
    %701 = vrot.lane.b32.xlu0 %v698, 64
    %v702 = vpop.permute.xlu0 %701
    %v704 = vmul.f32 %v697, %v702
    %706 = vrot.lane.b32.xlu0 %v704, 32
    %v707 = vpop.permute.xlu0 %706
    %v709 = vadd.f32 %v699, %v707
    %v710 = vtanh.pop %v709
    %712 = vrot.lane.b32.xlu0 %v710, 64
    %v713 = vpop.permute.xlu0 %712
    %v715 = vmul.f32 %v697, %v713
    %717 = vrot.lane.b32.xlu0 %v715, 32
    %v718 = vpop.permute.xlu0 %717
    %v719 = vsel %vm60, %v718, 0
    %721 = vmatprep.subr.mxu0 0.0
    %722 = vmatpush1.msra.mxu0 %v190
    %723 = vmatprep.subr.mxu0 0.0
    %724 = vmatpush1.msra.mxu0 %v191
    %725 = vmatprep.subr.mxu0 0.0
    %726 = vmatpush1.msra.mxu0 %v192
    %727 = vmatprep.subr.mxu0 0.0
    %728 = vmatpush1.msra.mxu0 %v193
    %729 = vmatprep.subr.mxu0 0.0
    %730 = vmatpush1.msra.mxu0 0.0
    %731 = vmatprep.subr.mxu0 0.0
    %732 = vmatpush1.msra.mxu0 0.0
    %733 = vmatprep.subr.mxu0 0.0
    %734 = vmatpush1.msra.mxu0 0.0
    %735 = vmatprep.subr.mxu0 0.0
    %736 = vmatpush1.msra.mxu0 0.0
    %737 = vmatprep.subr.mxu0 0.0
    %738 = vmatpush1.msra.mxu0 0.0
    %739 = vmatprep.subr.mxu0 0.0
    %740 = vmatpush1.msra.mxu0 0.0
    %741 = vmatprep.subr.mxu0 0.0
    %742 = vmatpush1.msra.mxu0 0.0
    %743 = vmatprep.subr.mxu0 0.0
    %744 = vmatpush1.msra.mxu0 0.0
    %745 = vmatprep.subr.mxu0 0.0
    %746 = vmatpush1.msra.mxu0 0.0
    %747 = vmatprep.subr.mxu0 0.0
    %748 = vmatpush1.msra.mxu0 0.0
    %749 = vmatprep.subr.mxu0 0.0
    %750 = vmatpush1.msra.mxu0 0.0
    %751 = vmatprep.subr.mxu0 0.0
    %752 = vmatpush1.msra.mxu0 0.0
    %753 = vmatprep.subr.mxu0 0.0
    %754 = vmatpush1.msra.mxu0 0.0
    %755 = vmatprep.subr.mxu0 0.0
    %756 = vmatpush1.msra.mxu0 0.0
    %757 = vmatprep.subr.mxu0 0.0
    %758 = vmatpush1.msra.mxu0 0.0
    %759 = vmatprep.subr.mxu0 0.0
    %760 = vmatpush1.msra.mxu0 0.0
    %761 = vmatprep.subr.mxu0 0.0
    %762 = vmatpush1.msra.mxu0 0.0
    %763 = vmatprep.subr.mxu0 0.0
    %764 = vmatpush1.msra.mxu0 0.0
    %765 = vmatprep.subr.mxu0 0.0
    %766 = vmatpush1.msra.mxu0 0.0
    %767 = vmatprep.subr.mxu0 0.0
    %768 = vmatpush1.msra.mxu0 0.0
    %769 = vmatprep.subr.mxu0 0.0
    %770 = vmatpush1.msra.mxu0 0.0
    %771 = vmatprep.subr.mxu0 0.0
    %772 = vmatpush1.msra.mxu0 0.0
    %773 = vmatprep.subr.mxu0 0.0
    %774 = vmatpush1.msra.mxu0 0.0
    %775 = vmatprep.subr.mxu0 0.0
    %776 = vmatpush1.msra.mxu0 0.0
    %777 = vmatprep.subr.mxu0 0.0
    %778 = vmatpush1.msra.mxu0 0.0
    %779 = vmatprep.subr.mxu0 0.0
    %780 = vmatpush1.msra.mxu0 0.0
    %781 = vmatprep.subr.mxu0 0.0
    %782 = vmatpush1.msra.mxu0 0.0
    %783 = vmatprep.subr.mxu0 0.0
    %784 = vmatpush1.msra.mxu0 0.0
    %785 = vmatprep.mubr.f32.mxu0 0.0
    %786 = vmatmul.mubr.f32.gmra.mrb[0].mxu0 %v719
    %v787 = vpop.f32.mrb[0].mxu0
    %v788 = vadd.f32 0.0, %v787
    %v789 = vpop.f32.mrb[0].mxu0
    %790 = vdwg.mxu0
    %v791 = vadd.f32 %v182, %v788
    %v792 = vxor.u32 %v791, 2147483648
    %v793 = vmul.f32 %v792, 1.442695
    %v794 = vpow.pop %v793
    %v795 = vadd.f32 %v794, 1.0
    %v796 = vrcp.pop %v795
    %v797 = vmul.f32 1.0, %v796
    %v798 = vtanh.pop %v791
    %v799 = vmul.f32 %v797, %v709
    %801 = vrot.lane.b32.xlu0 %v798, 64
    %v802 = vpop.permute.xlu0 %801
    %v804 = vmul.f32 %v797, %v802
    %806 = vrot.lane.b32.xlu0 %v804, 32
    %v807 = vpop.permute.xlu0 %806
    %v809 = vadd.f32 %v799, %v807
    %v810 = vtanh.pop %v809
    %812 = vrot.lane.b32.xlu0 %v810, 64
    %v813 = vpop.permute.xlu0 %812
    %v815 = vmul.f32 %v797, %v813
    %817 = vrot.lane.b32.xlu0 %v815, 32
    %v818 = vpop.permute.xlu0 %817
    %v819 = vsel %vm60, %v818, 0
    %821 = vmatprep.subr.mxu0 0.0
    %822 = vmatpush1.msra.mxu0 %v190
    %823 = vmatprep.subr.mxu0 0.0
    %824 = vmatpush1.msra.mxu0 %v191
    %825 = vmatprep.subr.mxu0 0.0
    %826 = vmatpush1.msra.mxu0 %v192
    %827 = vmatprep.subr.mxu0 0.0
    %828 = vmatpush1.msra.mxu0 %v193
    %829 = vmatprep.subr.mxu0 0.0
    %830 = vmatpush1.msra.mxu0 0.0
    %831 = vmatprep.subr.mxu0 0.0
    %832 = vmatpush1.msra.mxu0 0.0
    %833 = vmatprep.subr.mxu0 0.0
    %834 = vmatpush1.msra.mxu0 0.0
    %835 = vmatprep.subr.mxu0 0.0
    %836 = vmatpush1.msra.mxu0 0.0
    %837 = vmatprep.subr.mxu0 0.0
    %838 = vmatpush1.msra.mxu0 0.0
    %839 = vmatprep.subr.mxu0 0.0
    %840 = vmatpush1.msra.mxu0 0.0
    %841 = vmatprep.subr.mxu0 0.0
    %842 = vmatpush1.msra.mxu0 0.0
    %843 = vmatprep.subr.mxu0 0.0
    %844 = vmatpush1.msra.mxu0 0.0
    %845 = vmatprep.subr.mxu0 0.0
    %846 = vmatpush1.msra.mxu0 0.0
    %847 = vmatprep.subr.mxu0 0.0
    %848 = vmatpush1.msra.mxu0 0.0
    %849 = vmatprep.subr.mxu0 0.0
    %850 = vmatpush1.msra.mxu0 0.0
    %851 = vmatprep.subr.mxu0 0.0
    %852 = vmatpush1.msra.mxu0 0.0
    %853 = vmatprep.subr.mxu0 0.0
    %854 = vmatpush1.msra.mxu0 0.0
    %855 = vmatprep.subr.mxu0 0.0
    %856 = vmatpush1.msra.mxu0 0.0
    %857 = vmatprep.subr.mxu0 0.0
    %858 = vmatpush1.msra.mxu0 0.0
    %859 = vmatprep.subr.mxu0 0.0
    %860 = vmatpush1.msra.mxu0 0.0
    %861 = vmatprep.subr.mxu0 0.0
    %862 = vmatpush1.msra.mxu0 0.0
    %863 = vmatprep.subr.mxu0 0.0
    %864 = vmatpush1.msra.mxu0 0.0
    %865 = vmatprep.subr.mxu0 0.0
    %866 = vmatpush1.msra.mxu0 0.0
    %867 = vmatprep.subr.mxu0 0.0
    %868 = vmatpush1.msra.mxu0 0.0
    %869 = vmatprep.subr.mxu0 0.0
    %870 = vmatpush1.msra.mxu0 0.0
    %871 = vmatprep.subr.mxu0 0.0
    %872 = vmatpush1.msra.mxu0 0.0
    %873 = vmatprep.subr.mxu0 0.0
    %874 = vmatpush1.msra.mxu0 0.0
    %875 = vmatprep.subr.mxu0 0.0
    %876 = vmatpush1.msra.mxu0 0.0
    %877 = vmatprep.subr.mxu0 0.0
    %878 = vmatpush1.msra.mxu0 0.0
    %879 = vmatprep.subr.mxu0 0.0
    %880 = vmatpush1.msra.mxu0 0.0
    %881 = vmatprep.subr.mxu0 0.0
    %882 = vmatpush1.msra.mxu0 0.0
    %883 = vmatprep.subr.mxu0 0.0
    %884 = vmatpush1.msra.mxu0 0.0
    %885 = vmatprep.mubr.f32.mxu0 0.0
    %886 = vmatmul.mubr.f32.gmra.mrb[0].mxu0 %v819
    %v887 = vpop.f32.mrb[0].mxu0
    %v888 = vadd.f32 0.0, %v887
    %v889 = vpop.f32.mrb[0].mxu0
    %890 = vdwg.mxu0
    %v891 = vadd.f32 %v187, %v888
    %v892 = vxor.u32 %v891, 2147483648
    %v893 = vmul.f32 %v892, 1.442695
    %v894 = vpow.pop %v893
    %v895 = vadd.f32 %v894, 1.0
    %v896 = vrcp.pop %v895
    %v897 = vmul.f32 1.0, %v896
    %v898 = vtanh.pop %v891
    %v899 = vmul.f32 %v897, %v809
    %901 = vrot.lane.b32.xlu0 %v898, 64
    %v902 = vpop.permute.xlu0 %901
    %v904 = vmul.f32 %v897, %v902
    %906 = vrot.lane.b32.xlu0 %v904, 32
    %v907 = vpop.permute.xlu0 %906
    %v909 = vadd.f32 %v899, %v907
    %v910 = vtanh.pop %v909
    %912 = vrot.lane.b32.xlu0 %v910, 64
    %v913 = vpop.permute.xlu0 %912
    %v915 = vmul.f32 %v897, %v913
    %v916 = vld [vmem:[%s4] sm:$0xff]
    %v917 = vld [vmem:[%s4 + $0x8] sm:$0xff]
    %v918 = vld [vmem:[%s4 + $0x10] sm:$0xff]
    %v919 = vld [vmem:[%s4 + $0x18] sm:$0xff]
    %v920 = vld [vmem:[%s6] sm:$0x1]
    %v922 = vlaneseq
    %v923 = vshrl.u32 %v922, 7
    %v924 = vsub.s32 0, %v923
    %v925 = vrot.slane %v920, %v924
    %928 = vrot.lane.b32.xlu0 %v915, 32
    %v929 = vpop.permute.xlu0 %928
    %v930 = vsel %vm60, %v929, 0
    %932 = vmatprep.subr.mxu0 0.0
    %933 = vmatpush1.msra.mxu0 %v916
    %934 = vmatprep.subr.mxu0 0.0
    %935 = vmatpush1.msra.mxu0 %v917
    %936 = vmatprep.subr.mxu0 0.0
    %937 = vmatpush1.msra.mxu0 %v918
    %938 = vmatprep.subr.mxu0 0.0
    %939 = vmatpush1.msra.mxu0 %v919
    %940 = vmatprep.subr.mxu0 0.0
    %941 = vmatpush1.msra.mxu0 0.0
    %942 = vmatprep.subr.mxu0 0.0
    %943 = vmatpush1.msra.mxu0 0.0
    %944 = vmatprep.subr.mxu0 0.0
    %945 = vmatpush1.msra.mxu0 0.0
    %946 = vmatprep.subr.mxu0 0.0
    %947 = vmatpush1.msra.mxu0 0.0
    %948 = vmatprep.subr.mxu0 0.0
    %949 = vmatpush1.msra.mxu0 0.0
    %950 = vmatprep.subr.mxu0 0.0
    %951 = vmatpush1.msra.mxu0 0.0
    %952 = vmatprep.subr.mxu0 0.0
    %953 = vmatpush1.msra.mxu0 0.0
    %954 = vmatprep.subr.mxu0 0.0
    %955 = vmatpush1.msra.mxu0 0.0
    %956 = vmatprep.subr.mxu0 0.0
    %957 = vmatpush1.msra.mxu0 0.0
    %958 = vmatprep.subr.mxu0 0.0
    %959 = vmatpush1.msra.mxu0 0.0
    %960 = vmatprep.subr.mxu0 0.0
    %961 = vmatpush1.msra.mxu0 0.0
    %962 = vmatprep.subr.mxu0 0.0
    %963 = vmatpush1.msra.mxu0 0.0
    %964 = vmatprep.subr.mxu0 0.0
    %965 = vmatpush1.msra.mxu0 0.0
    %966 = vmatprep.subr.mxu0 0.0
    %967 = vmatpush1.msra.mxu0 0.0
    %968 = vmatprep.subr.mxu0 0.0
    %969 = vmatpush1.msra.mxu0 0.0
    %970 = vmatprep.subr.mxu0 0.0
    %971 = vmatpush1.msra.mxu0 0.0
    %972 = vmatprep.subr.mxu0 0.0
    %973 = vmatpush1.msra.mxu0 0.0
    %974 = vmatprep.subr.mxu0 0.0
    %975 = vmatpush1.msra.mxu0 0.0
    %976 = vmatprep.subr.mxu0 0.0
    %977 = vmatpush1.msra.mxu0 0.0
    %978 = vmatprep.subr.mxu0 0.0
    %979 = vmatpush1.msra.mxu0 0.0
    %980 = vmatprep.subr.mxu0 0.0
    %981 = vmatpush1.msra.mxu0 0.0
    %982 = vmatprep.subr.mxu0 0.0
    %983 = vmatpush1.msra.mxu0 0.0
    %984 = vmatprep.subr.mxu0 0.0
    %985 = vmatpush1.msra.mxu0 0.0
    %986 = vmatprep.subr.mxu0 0.0
    %987 = vmatpush1.msra.mxu0 0.0
    %988 = vmatprep.subr.mxu0 0.0
    %989 = vmatpush1.msra.mxu0 0.0
    %990 = vmatprep.subr.mxu0 0.0
    %991 = vmatpush1.msra.mxu0 0.0
    %992 = vmatprep.subr.mxu0 0.0
    %993 = vmatpush1.msra.mxu0 0.0
    %994 = vmatprep.subr.mxu0 0.0
    %995 = vmatpush1.msra.mxu0 0.0
    %996 = vmatprep.mubr.f32.mxu0 0.0
    %997 = vmatmul.mubr.f32.gmra.mrb[0].mxu0 %v215
    %v998 = vpop.f32.mrb[0].mxu0
    %v999 = vadd.f32 %v925, %v998
    %v1000 = vpop.f32.mrb[0].mxu0
    %1001 = vmatprep.mubr.f32.mxu0 0.0
    %1002 = vmatmul.mubr.f32.gmra.mrb[0].mxu0 %v319
    %v1003 = vpop.f32.mrb[0].mxu0
    %v1004 = vadd.f32 %v925, %v1003
    %v1005 = vpop.f32.mrb[0].mxu0
    %1006 = vmatprep.mubr.f32.mxu0 0.0
    %1007 = vmatmul.mubr.f32.gmra.mrb[0].mxu0 %v419
    %v1008 = vpop.f32.mrb[0].mxu0
    %v1009 = vadd.f32 %v925, %v1008
    %v1010 = vpop.f32.mrb[0].mxu0
    %1011 = vmatprep.mubr.f32.mxu0 0.0
    %1012 = vmatmul.mubr.f32.gmra.mrb[0].mxu0 %v519
    %v1013 = vpop.f32.mrb[0].mxu0
    %v1014 = vadd.f32 %v925, %v1013
    %v1015 = vpop.f32.mrb[0].mxu0
    %1016 = vmatprep.mubr.f32.mxu0 0.0
    %1017 = vmatmul.mubr.f32.gmra.mrb[0].mxu0 %v619
    %v1018 = vpop.f32.mrb[0].mxu0
    %v1019 = vadd.f32 %v925, %v1018
    %v1020 = vpop.f32.mrb[0].mxu0
    %1021 = vmatprep.mubr.f32.mxu0 0.0
    %1022 = vmatmul.mubr.f32.gmra.mrb[0].mxu0 %v719
    %v1023 = vpop.f32.mrb[0].mxu0
    %v1024 = vadd.f32 %v925, %v1023
    %v1025 = vpop.f32.mrb[0].mxu0
    %1026 = vmatprep.mubr.f32.mxu0 0.0
    %1027 = vmatmul.mubr.f32.gmra.mrb[0].mxu0 %v819
    %v1028 = vpop.f32.mrb[0].mxu0
    %v1029 = vadd.f32 %v925, %v1028
    %v1030 = vpop.f32.mrb[0].mxu0
    %1031 = vmatprep.mubr.f32.mxu0 0.0
    %1032 = vmatmul.mubr.f32.gmra.mrb[0].mxu0 %v930
    %v1033 = vpop.f32.mrb[0].mxu0
    %v1034 = vadd.f32 %v925, %v1033
    %v1035 = vpop.f32.mrb[0].mxu0
    %1036 = vdwg.mxu0
    %v1037 = vld [vmem:[#allocation2] sm:$0xff]
    %v1038 = vld [vmem:[#allocation2 + $0x8] sm:$0xff]
    %v1039 = vld [vmem:[#allocation2 + $0x10] sm:$0xff]
    %v1040 = vld [vmem:[#allocation2 + $0x18] sm:$0xff]
    %v1041 = vxor.u32 %v999, 2147483648
    %v1042 = vmul.f32 %v1041, 1.442695
    %v1043 = vpow.pop %v1042
    %v1044 = vadd.f32 %v1043, 1.0
    %v1045 = vrcp.pop %v1044
    %v1046 = vmul.f32 1.0, %v1045
    %v1047 = vtanh.pop %v999
    %1049 = vrot.lane.b32.xlu0 %v1047, 64
    %v1050 = vpop.permute.xlu0 %1049
    %v1052 = vmul.f32 %v1046, %v1050
    %v1053 = vtanh.pop %v1052
    %1055 = vrot.lane.b32.xlu0 %v1053, 96
    %v1056 = vpop.permute.xlu0 %1055
    %v1058 = vmul.f32 %v1046, %v1056
    %1060 = vrot.lane.b32.xlu0 %v1058, 32
    %v1061 = vpop.permute.xlu0 %1060
    %v1062 = vsel %vm60, %v1061, 0
    %1064 = vmatprep.subr.mxu0 0.0
    %1065 = vmatpush1.msra.mxu0 %v1037
    %1066 = vmatprep.subr.mxu0 0.0
    %1067 = vmatpush1.msra.mxu0 %v1038
    %1068 = vmatprep.subr.mxu0 0.0
    %1069 = vmatpush1.msra.mxu0 %v1039
    %1070 = vmatprep.subr.mxu0 0.0
    %1071 = vmatpush1.msra.mxu0 %v1040
    %1072 = vmatprep.subr.mxu0 0.0
    %1073 = vmatpush1.msra.mxu0 0.0
    %1074 = vmatprep.subr.mxu0 0.0
    %1075 = vmatpush1.msra.mxu0 0.0
    %1076 = vmatprep.subr.mxu0 0.0
    %1077 = vmatpush1.msra.mxu0 0.0
    %1078 = vmatprep.subr.mxu0 0.0
    %1079 = vmatpush1.msra.mxu0 0.0
    %1080 = vmatprep.subr.mxu0 0.0
    %1081 = vmatpush1.msra.mxu0 0.0
    %1082 = vmatprep.subr.mxu0 0.0
    %1083 = vmatpush1.msra.mxu0 0.0
    %1084 = vmatprep.subr.mxu0 0.0
    %1085 = vmatpush1.msra.mxu0 0.0
    %1086 = vmatprep.subr.mxu0 0.0
    %1087 = vmatpush1.msra.mxu0 0.0
    %1088 = vmatprep.subr.mxu0 0.0
    %1089 = vmatpush1.msra.mxu0 0.0
    %1090 = vmatprep.subr.mxu0 0.0
    %1091 = vmatpush1.msra.mxu0 0.0
    %1092 = vmatprep.subr.mxu0 0.0
    %1093 = vmatpush1.msra.mxu0 0.0
    %1094 = vmatprep.subr.mxu0 0.0
    %1095 = vmatpush1.msra.mxu0 0.0
    %1096 = vmatprep.subr.mxu0 0.0
    %1097 = vmatpush1.msra.mxu0 0.0
    %1098 = vmatprep.subr.mxu0 0.0
    %1099 = vmatpush1.msra.mxu0 0.0
    %1100 = vmatprep.subr.mxu0 0.0
    %1101 = vmatpush1.msra.mxu0 0.0
    %1102 = vmatprep.subr.mxu0 0.0
    %1103 = vmatpush1.msra.mxu0 0.0
    %1104 = vmatprep.subr.mxu0 0.0
    %1105 = vmatpush1.msra.mxu0 0.0
    %1106 = vmatprep.subr.mxu0 0.0
    %1107 = vmatpush1.msra.mxu0 0.0
    %1108 = vmatprep.subr.mxu0 0.0
    %1109 = vmatpush1.msra.mxu0 0.0
    %1110 = vmatprep.subr.mxu0 0.0
    %1111 = vmatpush1.msra.mxu0 0.0
    %1112 = vmatprep.subr.mxu0 0.0
    %1113 = vmatpush1.msra.mxu0 0.0
    %1114 = vmatprep.subr.mxu0 0.0
    %1115 = vmatpush1.msra.mxu0 0.0
    %1116 = vmatprep.subr.mxu0 0.0
    %1117 = vmatpush1.msra.mxu0 0.0
    %1118 = vmatprep.subr.mxu0 0.0
    %1119 = vmatpush1.msra.mxu0 0.0
    %1120 = vmatprep.subr.mxu0 0.0
    %1121 = vmatpush1.msra.mxu0 0.0
    %1122 = vmatprep.subr.mxu0 0.0
    %1123 = vmatpush1.msra.mxu0 0.0
    %1124 = vmatprep.subr.mxu0 0.0
    %1125 = vmatpush1.msra.mxu0 0.0
    %1126 = vmatprep.subr.mxu0 0.0
    %1127 = vmatpush1.msra.mxu0 0.0
    %1128 = vmatprep.mubr.f32.mxu0 0.0
    %1129 = vmatmul.mubr.f32.gmra.mrb[0].mxu0 %v1062
    %v1130 = vpop.f32.mrb[0].mxu0
    %v1131 = vadd.f32 0.0, %v1130
    %v1132 = vpop.f32.mrb[0].mxu0
    %1133 = vdwg.mxu0
    %v1134 = vadd.f32 %v1004, %v1131
    %v1135 = vxor.u32 %v1134, 2147483648
    %v1136 = vmul.f32 %v1135, 1.442695
    %v1137 = vpow.pop %v1136
    %v1138 = vadd.f32 %v1137, 1.0
    %v1139 = vrcp.pop %v1138
    %v1140 = vmul.f32 1.0, %v1139
    %v1141 = vtanh.pop %v1134
    %1143 = vrot.lane.b32.xlu0 %v1052, 32
    %v1144 = vpop.permute.xlu0 %1143
    %v1146 = vmul.f32 %v1140, %v1144
    %1148 = vrot.lane.b32.xlu0 %v1141, 64
    %v1149 = vpop.permute.xlu0 %1148
    %v1151 = vmul.f32 %v1140, %v1149
    %1153 = vrot.lane.b32.xlu0 %v1151, 32
    %v1154 = vpop.permute.xlu0 %1153
    %v1156 = vadd.f32 %v1146, %v1154
    %v1157 = vtanh.pop %v1156
    %1159 = vrot.lane.b32.xlu0 %v1157, 64
    %v1160 = vpop.permute.xlu0 %1159
    %v1162 = vmul.f32 %v1140, %v1160
    %1164 = vrot.lane.b32.xlu0 %v1162, 32
    %v1165 = vpop.permute.xlu0 %1164
    %v1166 = vsel %vm60, %v1165, 0
    %1168 = vmatprep.subr.mxu0 0.0
    %1169 = vmatpush1.msra.mxu0 %v1037
    %1170 = vmatprep.subr.mxu0 0.0
    %1171 = vmatpush1.msra.mxu0 %v1038
    %1172 = vmatprep.subr.mxu0 0.0
    %1173 = vmatpush1.msra.mxu0 %v1039
    %1174 = vmatprep.subr.mxu0 0.0
    %1175 = vmatpush1.msra.mxu0 %v1040
    %1176 = vmatprep.subr.mxu0 0.0
    %1177 = vmatpush1.msra.mxu0 0.0
    %1178 = vmatprep.subr.mxu0 0.0
    %1179 = vmatpush1.msra.mxu0 0.0
    %1180 = vmatprep.subr.mxu0 0.0
    %1181 = vmatpush1.msra.mxu0 0.0
    %1182 = vmatprep.subr.mxu0 0.0
    %1183 = vmatpush1.msra.mxu0 0.0
    %1184 = vmatprep.subr.mxu0 0.0
    %1185 = vmatpush1.msra.mxu0 0.0
    %1186 = vmatprep.subr.mxu0 0.0
    %1187 = vmatpush1.msra.mxu0 0.0
    %1188 = vmatprep.subr.mxu0 0.0
    %1189 = vmatpush1.msra.mxu0 0.0
    %1190 = vmatprep.subr.mxu0 0.0
    %1191 = vmatpush1.msra.mxu0 0.0
    %1192 = vmatprep.subr.mxu0 0.0
    %1193 = vmatpush1.msra.mxu0 0.0
    %1194 = vmatprep.subr.mxu0 0.0
    %1195 = vmatpush1.msra.mxu0 0.0
    %1196 = vmatprep.subr.mxu0 0.0
    %1197 = vmatpush1.msra.mxu0 0.0
    %1198 = vmatprep.subr.mxu0 0.0
    %1199 = vmatpush1.msra.mxu0 0.0
    %1200 = vmatprep.subr.mxu0 0.0
    %1201 = vmatpush1.msra.mxu0 0.0
    %1202 = vmatprep.subr.mxu0 0.0
    %1203 = vmatpush1.msra.mxu0 0.0
    %1204 = vmatprep.subr.mxu0 0.0
    %1205 = vmatpush1.msra.mxu0 0.0
    %1206 = vmatprep.subr.mxu0 0.0
    %1207 = vmatpush1.msra.mxu0 0.0
    %1208 = vmatprep.subr.mxu0 0.0
    %1209 = vmatpush1.msra.mxu0 0.0
    %1210 = vmatprep.subr.mxu0 0.0
    %1211 = vmatpush1.msra.mxu0 0.0
    %1212 = vmatprep.subr.mxu0 0.0
    %1213 = vmatpush1.msra.mxu0 0.0
    %1214 = vmatprep.subr.mxu0 0.0
    %1215 = vmatpush1.msra.mxu0 0.0
    %1216 = vmatprep.subr.mxu0 0.0
    %1217 = vmatpush1.msra.mxu0 0.0
    %1218 = vmatprep.subr.mxu0 0.0
    %1219 = vmatpush1.msra.mxu0 0.0
    %1220 = vmatprep.subr.mxu0 0.0
    %1221 = vmatpush1.msra.mxu0 0.0
    %1222 = vmatprep.subr.mxu0 0.0
    %1223 = vmatpush1.msra.mxu0 0.0
    %1224 = vmatprep.subr.mxu0 0.0
    %1225 = vmatpush1.msra.mxu0 0.0
    %1226 = vmatprep.subr.mxu0 0.0
    %1227 = vmatpush1.msra.mxu0 0.0
    %1228 = vmatprep.subr.mxu0 0.0
    %1229 = vmatpush1.msra.mxu0 0.0
    %1230 = vmatprep.subr.mxu0 0.0
    %1231 = vmatpush1.msra.mxu0 0.0
    %1232 = vmatprep.mubr.f32.mxu0 0.0
    %1233 = vmatmul.mubr.f32.gmra.mrb[0].mxu0 %v1166
    %v1234 = vpop.f32.mrb[0].mxu0
    %v1235 = vadd.f32 0.0, %v1234
    %v1236 = vpop.f32.mrb[0].mxu0
    %1237 = vdwg.mxu0
    %v1238 = vadd.f32 %v1009, %v1235
    %v1239 = vxor.u32 %v1238, 2147483648
    %v1240 = vmul.f32 %v1239, 1.442695
    %v1241 = vpow.pop %v1240
    %v1242 = vadd.f32 %v1241, 1.0
    %v1243 = vrcp.pop %v1242
    %v1244 = vmul.f32 1.0, %v1243
    %v1245 = vtanh.pop %v1238
    %v1246 = vmul.f32 %v1244, %v1156
    %1248 = vrot.lane.b32.xlu0 %v1245, 64
    %v1249 = vpop.permute.xlu0 %1248
    %v1251 = vmul.f32 %v1244, %v1249
    %1253 = vrot.lane.b32.xlu0 %v1251, 32
    %v1254 = vpop.permute.xlu0 %1253
    %v1256 = vadd.f32 %v1246, %v1254
    %v1257 = vtanh.pop %v1256
    %1259 = vrot.lane.b32.xlu0 %v1257, 64
    %v1260 = vpop.permute.xlu0 %1259
    %v1262 = vmul.f32 %v1244, %v1260
    %1264 = vrot.lane.b32.xlu0 %v1262, 32
    %v1265 = vpop.permute.xlu0 %1264
    %v1266 = vsel %vm60, %v1265, 0
    %1268 = vmatprep.subr.mxu0 0.0
    %1269 = vmatpush1.msra.mxu0 %v1037
    %1270 = vmatprep.subr.mxu0 0.0
    %1271 = vmatpush1.msra.mxu0 %v1038
    %1272 = vmatprep.subr.mxu0 0.0
    %1273 = vmatpush1.msra.mxu0 %v1039
    %1274 = vmatprep.subr.mxu0 0.0
    %1275 = vmatpush1.msra.mxu0 %v1040
    %1276 = vmatprep.subr.mxu0 0.0
    %1277 = vmatpush1.msra.mxu0 0.0
    %1278 = vmatprep.subr.mxu0 0.0
    %1279 = vmatpush1.msra.mxu0 0.0
    %1280 = vmatprep.subr.mxu0 0.0
    %1281 = vmatpush1.msra.mxu0 0.0
    %1282 = vmatprep.subr.mxu0 0.0
    %1283 = vmatpush1.msra.mxu0 0.0
    %1284 = vmatprep.subr.mxu0 0.0
    %1285 = vmatpush1.msra.mxu0 0.0
    %1286 = vmatprep.subr.mxu0 0.0
    %1287 = vmatpush1.msra.mxu0 0.0
    %1288 = vmatprep.subr.mxu0 0.0
    %1289 = vmatpush1.msra.mxu0 0.0
    %1290 = vmatprep.subr.mxu0 0.0
    %1291 = vmatpush1.msra.mxu0 0.0
    %1292 = vmatprep.subr.mxu0 0.0
    %1293 = vmatpush1.msra.mxu0 0.0
    %1294 = vmatprep.subr.mxu0 0.0
    %1295 = vmatpush1.msra.mxu0 0.0
    %1296 = vmatprep.subr.mxu0 0.0
    %1297 = vmatpush1.msra.mxu0 0.0
    %1298 = vmatprep.subr.mxu0 0.0
    %1299 = vmatpush1.msra.mxu0 0.0
    %1300 = vmatprep.subr.mxu0 0.0
    %1301 = vmatpush1.msra.mxu0 0.0
    %1302 = vmatprep.subr.mxu0 0.0
    %1303 = vmatpush1.msra.mxu0 0.0
    %1304 = vmatprep.subr.mxu0 0.0
    %1305 = vmatpush1.msra.mxu0 0.0
    %1306 = vmatprep.subr.mxu0 0.0
    %1307 = vmatpush1.msra.mxu0 0.0
    %1308 = vmatprep.subr.mxu0 0.0
    %1309 = vmatpush1.msra.mxu0 0.0
    %1310 = vmatprep.subr.mxu0 0.0
    %1311 = vmatpush1.msra.mxu0 0.0
    %1312 = vmatprep.subr.mxu0 0.0
    %1313 = vmatpush1.msra.mxu0 0.0
    %1314 = vmatprep.subr.mxu0 0.0
    %1315 = vmatpush1.msra.mxu0 0.0
    %1316 = vmatprep.subr.mxu0 0.0
    %1317 = vmatpush1.msra.mxu0 0.0
    %1318 = vmatprep.subr.mxu0 0.0
    %1319 = vmatpush1.msra.mxu0 0.0
    %1320 = vmatprep.subr.mxu0 0.0
    %1321 = vmatpush1.msra.mxu0 0.0
    %1322 = vmatprep.subr.mxu0 0.0
    %1323 = vmatpush1.msra.mxu0 0.0
    %1324 = vmatprep.subr.mxu0 0.0
    %1325 = vmatpush1.msra.mxu0 0.0
    %1326 = vmatprep.subr.mxu0 0.0
    %1327 = vmatpush1.msra.mxu0 0.0
    %1328 = vmatprep.subr.mxu0 0.0
    %1329 = vmatpush1.msra.mxu0 0.0
    %1330 = vmatprep.subr.mxu0 0.0
    %1331 = vmatpush1.msra.mxu0 0.0
    %1332 = vmatprep.mubr.f32.mxu0 0.0
    %1333 = vmatmul.mubr.f32.gmra.mrb[0].mxu0 %v1266
    %v1334 = vpop.f32.mrb[0].mxu0
    %v1335 = vadd.f32 0.0, %v1334
    %v1336 = vpop.f32.mrb[0].mxu0
    %1337 = vdwg.mxu0
    %v1338 = vadd.f32 %v1014, %v1335
    %v1339 = vxor.u32 %v1338, 2147483648
    %v1340 = vmul.f32 %v1339, 1.442695
    %v1341 = vpow.pop %v1340
    %v1342 = vadd.f32 %v1341, 1.0
    %v1343 = vrcp.pop %v1342
    %v1344 = vmul.f32 1.0, %v1343
    %v1345 = vtanh.pop %v1338
    %v1346 = vmul.f32 %v1344, %v1256
    %1348 = vrot.lane.b32.xlu0 %v1345, 64
    %v1349 = vpop.permute.xlu0 %1348
    %v1351 = vmul.f32 %v1344, %v1349
    %1353 = vrot.lane.b32.xlu0 %v1351, 32
    %v1354 = vpop.permute.xlu0 %1353
    %v1356 = vadd.f32 %v1346, %v1354
    %v1357 = vtanh.pop %v1356
    %1359 = vrot.lane.b32.xlu0 %v1357, 64
    %v1360 = vpop.permute.xlu0 %1359
    %v1362 = vmul.f32 %v1344, %v1360
    %1364 = vrot.lane.b32.xlu0 %v1362, 32
    %v1365 = vpop.permute.xlu0 %1364
    %v1366 = vsel %vm60, %v1365, 0
    %1368 = vmatprep.subr.mxu0 0.0
    %1369 = vmatpush1.msra.mxu0 %v1037
    %1370 = vmatprep.subr.mxu0 0.0
    %1371 = vmatpush1.msra.mxu0 %v1038
    %1372 = vmatprep.subr.mxu0 0.0
    %1373 = vmatpush1.msra.mxu0 %v1039
    %1374 = vmatprep.subr.mxu0 0.0
    %1375 = vmatpush1.msra.mxu0 %v1040
    %1376 = vmatprep.subr.mxu0 0.0
    %1377 = vmatpush1.msra.mxu0 0.0
    %1378 = vmatprep.subr.mxu0 0.0
    %1379 = vmatpush1.msra.mxu0 0.0
    %1380 = vmatprep.subr.mxu0 0.0
    %1381 = vmatpush1.msra.mxu0 0.0
    %1382 = vmatprep.subr.mxu0 0.0
    %1383 = vmatpush1.msra.mxu0 0.0
    %1384 = vmatprep.subr.mxu0 0.0
    %1385 = vmatpush1.msra.mxu0 0.0
    %1386 = vmatprep.subr.mxu0 0.0
    %1387 = vmatpush1.msra.mxu0 0.0
    %1388 = vmatprep.subr.mxu0 0.0
    %1389 = vmatpush1.msra.mxu0 0.0
    %1390 = vmatprep.subr.mxu0 0.0
    %1391 = vmatpush1.msra.mxu0 0.0
    %1392 = vmatprep.subr.mxu0 0.0
    %1393 = vmatpush1.msra.mxu0 0.0
    %1394 = vmatprep.subr.mxu0 0.0
    %1395 = vmatpush1.msra.mxu0 0.0
    %1396 = vmatprep.subr.mxu0 0.0
    %1397 = vmatpush1.msra.mxu0 0.0
    %1398 = vmatprep.subr.mxu0 0.0
    %1399 = vmatpush1.msra.mxu0 0.0
    %1400 = vmatprep.subr.mxu0 0.0
    %1401 = vmatpush1.msra.mxu0 0.0
    %1402 = vmatprep.subr.mxu0 0.0
    %1403 = vmatpush1.msra.mxu0 0.0
    %1404 = vmatprep.subr.mxu0 0.0
    %1405 = vmatpush1.msra.mxu0 0.0
    %1406 = vmatprep.subr.mxu0 0.0
    %1407 = vmatpush1.msra.mxu0 0.0
    %1408 = vmatprep.subr.mxu0 0.0
    %1409 = vmatpush1.msra.mxu0 0.0
    %1410 = vmatprep.subr.mxu0 0.0
    %1411 = vmatpush1.msra.mxu0 0.0
    %1412 = vmatprep.subr.mxu0 0.0
    %1413 = vmatpush1.msra.mxu0 0.0
    %1414 = vmatprep.subr.mxu0 0.0
    %1415 = vmatpush1.msra.mxu0 0.0
    %1416 = vmatprep.subr.mxu0 0.0
    %1417 = vmatpush1.msra.mxu0 0.0
    %1418 = vmatprep.subr.mxu0 0.0
    %1419 = vmatpush1.msra.mxu0 0.0
    %1420 = vmatprep.subr.mxu0 0.0
    %1421 = vmatpush1.msra.mxu0 0.0
    %1422 = vmatprep.subr.mxu0 0.0
    %1423 = vmatpush1.msra.mxu0 0.0
    %1424 = vmatprep.subr.mxu0 0.0
    %1425 = vmatpush1.msra.mxu0 0.0
    %1426 = vmatprep.subr.mxu0 0.0
    %1427 = vmatpush1.msra.mxu0 0.0
    %1428 = vmatprep.subr.mxu0 0.0
    %1429 = vmatpush1.msra.mxu0 0.0
    %1430 = vmatprep.subr.mxu0 0.0
    %1431 = vmatpush1.msra.mxu0 0.0
    %1432 = vmatprep.mubr.f32.mxu0 0.0
    %1433 = vmatmul.mubr.f32.gmra.mrb[0].mxu0 %v1366
    %v1434 = vpop.f32.mrb[0].mxu0
    %v1435 = vadd.f32 0.0, %v1434
    %v1436 = vpop.f32.mrb[0].mxu0
    %1437 = vdwg.mxu0
    %v1438 = vadd.f32 %v1019, %v1435
    %v1439 = vxor.u32 %v1438, 2147483648
    %v1440 = vmul.f32 %v1439, 1.442695
    %v1441 = vpow.pop %v1440
    %v1442 = vadd.f32 %v1441, 1.0
    %v1443 = vrcp.pop %v1442
    %v1444 = vmul.f32 1.0, %v1443
    %v1445 = vtanh.pop %v1438
    %v1446 = vmul.f32 %v1444, %v1356
    %1448 = vrot.lane.b32.xlu0 %v1445, 64
    %v1449 = vpop.permute.xlu0 %1448
    %v1451 = vmul.f32 %v1444, %v1449
    %1453 = vrot.lane.b32.xlu0 %v1451, 32
    %v1454 = vpop.permute.xlu0 %1453
    %v1456 = vadd.f32 %v1446, %v1454
    %v1457 = vtanh.pop %v1456
    %1459 = vrot.lane.b32.xlu0 %v1457, 64
    %v1460 = vpop.permute.xlu0 %1459
    %v1462 = vmul.f32 %v1444, %v1460
    %1464 = vrot.lane.b32.xlu0 %v1462, 32
    %v1465 = vpop.permute.xlu0 %1464
    %v1466 = vsel %vm60, %v1465, 0
    %1468 = vmatprep.subr.mxu0 0.0
    %1469 = vmatpush1.msra.mxu0 %v1037
    %1470 = vmatprep.subr.mxu0 0.0
    %1471 = vmatpush1.msra.mxu0 %v1038
    %1472 = vmatprep.subr.mxu0 0.0
    %1473 = vmatpush1.msra.mxu0 %v1039
    %1474 = vmatprep.subr.mxu0 0.0
    %1475 = vmatpush1.msra.mxu0 %v1040
    %1476 = vmatprep.subr.mxu0 0.0
    %1477 = vmatpush1.msra.mxu0 0.0
    %1478 = vmatprep.subr.mxu0 0.0
    %1479 = vmatpush1.msra.mxu0 0.0
    %1480 = vmatprep.subr.mxu0 0.0
    %1481 = vmatpush1.msra.mxu0 0.0
    %1482 = vmatprep.subr.mxu0 0.0
    %1483 = vmatpush1.msra.mxu0 0.0
    %1484 = vmatprep.subr.mxu0 0.0
    %1485 = vmatpush1.msra.mxu0 0.0
    %1486 = vmatprep.subr.mxu0 0.0
    %1487 = vmatpush1.msra.mxu0 0.0
    %1488 = vmatprep.subr.mxu0 0.0
    %1489 = vmatpush1.msra.mxu0 0.0
    %1490 = vmatprep.subr.mxu0 0.0
    %1491 = vmatpush1.msra.mxu0 0.0
    %1492 = vmatprep.subr.mxu0 0.0
    %1493 = vmatpush1.msra.mxu0 0.0
    %1494 = vmatprep.subr.mxu0 0.0
    %1495 = vmatpush1.msra.mxu0 0.0
    %1496 = vmatprep.subr.mxu0 0.0
    %1497 = vmatpush1.msra.mxu0 0.0
    %1498 = vmatprep.subr.mxu0 0.0
    %1499 = vmatpush1.msra.mxu0 0.0
    %1500 = vmatprep.subr.mxu0 0.0
    %1501 = vmatpush1.msra.mxu0 0.0
    %1502 = vmatprep.subr.mxu0 0.0
    %1503 = vmatpush1.msra.mxu0 0.0
    %1504 = vmatprep.subr.mxu0 0.0
    %1505 = vmatpush1.msra.mxu0 0.0
    %1506 = vmatprep.subr.mxu0 0.0
    %1507 = vmatpush1.msra.mxu0 0.0
    %1508 = vmatprep.subr.mxu0 0.0
    %1509 = vmatpush1.msra.mxu0 0.0
    %1510 = vmatprep.subr.mxu0 0.0
    %1511 = vmatpush1.msra.mxu0 0.0
    %1512 = vmatprep.subr.mxu0 0.0
    %1513 = vmatpush1.msra.mxu0 0.0
    %1514 = vmatprep.subr.mxu0 0.0
    %1515 = vmatpush1.msra.mxu0 0.0
    %1516 = vmatprep.subr.mxu0 0.0
    %1517 = vmatpush1.msra.mxu0 0.0
    %1518 = vmatprep.subr.mxu0 0.0
    %1519 = vmatpush1.msra.mxu0 0.0
    %1520 = vmatprep.subr.mxu0 0.0
    %1521 = vmatpush1.msra.mxu0 0.0
    %1522 = vmatprep.subr.mxu0 0.0
    %1523 = vmatpush1.msra.mxu0 0.0
    %1524 = vmatprep.subr.mxu0 0.0
    %1525 = vmatpush1.msra.mxu0 0.0
    %1526 = vmatprep.subr.mxu0 0.0
    %1527 = vmatpush1.msra.mxu0 0.0
    %1528 = vmatprep.subr.mxu0 0.0
    %1529 = vmatpush1.msra.mxu0 0.0
    %1530 = vmatprep.subr.mxu0 0.0
    %1531 = vmatpush1.msra.mxu0 0.0
    %1532 = vmatprep.mubr.f32.mxu0 0.0
    %1533 = vmatmul.mubr.f32.gmra.mrb[0].mxu0 %v1466
    %v1534 = vpop.f32.mrb[0].mxu0
    %v1535 = vadd.f32 0.0, %v1534
    %v1536 = vpop.f32.mrb[0].mxu0
    %1537 = vdwg.mxu0
    %v1538 = vadd.f32 %v1024, %v1535
    %v1539 = vxor.u32 %v1538, 2147483648
    %v1540 = vmul.f32 %v1539, 1.442695
    %v1541 = vpow.pop %v1540
    %v1542 = vadd.f32 %v1541, 1.0
    %v1543 = vrcp.pop %v1542
    %v1544 = vmul.f32 1.0, %v1543
    %v1545 = vtanh.pop %v1538
    %v1546 = vmul.f32 %v1544, %v1456
    %1548 = vrot.lane.b32.xlu0 %v1545, 64
    %v1549 = vpop.permute.xlu0 %1548
    %v1551 = vmul.f32 %v1544, %v1549
    %1553 = vrot.lane.b32.xlu0 %v1551, 32
    %v1554 = vpop.permute.xlu0 %1553
    %v1556 = vadd.f32 %v1546, %v1554
    %v1557 = vtanh.pop %v1556
    %1559 = vrot.lane.b32.xlu0 %v1557, 64
    %v1560 = vpop.permute.xlu0 %1559
    %v1562 = vmul.f32 %v1544, %v1560
    %1564 = vrot.lane.b32.xlu0 %v1562, 32
    %v1565 = vpop.permute.xlu0 %1564
    %v1566 = vsel %vm60, %v1565, 0
    %1568 = vmatprep.subr.mxu0 0.0
    %1569 = vmatpush1.msra.mxu0 %v1037
    %1570 = vmatprep.subr.mxu0 0.0
    %1571 = vmatpush1.msra.mxu0 %v1038
    %1572 = vmatprep.subr.mxu0 0.0
    %1573 = vmatpush1.msra.mxu0 %v1039
    %1574 = vmatprep.subr.mxu0 0.0
    %1575 = vmatpush1.msra.mxu0 %v1040
    %1576 = vmatprep.subr.mxu0 0.0
    %1577 = vmatpush1.msra.mxu0 0.0
    %1578 = vmatprep.subr.mxu0 0.0
    %1579 = vmatpush1.msra.mxu0 0.0
    %1580 = vmatprep.subr.mxu0 0.0
    %1581 = vmatpush1.msra.mxu0 0.0
    %1582 = vmatprep.subr.mxu0 0.0
    %1583 = vmatpush1.msra.mxu0 0.0
    %1584 = vmatprep.subr.mxu0 0.0
    %1585 = vmatpush1.msra.mxu0 0.0
    %1586 = vmatprep.subr.mxu0 0.0
    %1587 = vmatpush1.msra.mxu0 0.0
    %1588 = vmatprep.subr.mxu0 0.0
    %1589 = vmatpush1.msra.mxu0 0.0
    %1590 = vmatprep.subr.mxu0 0.0
    %1591 = vmatpush1.msra.mxu0 0.0
    %1592 = vmatprep.subr.mxu0 0.0
    %1593 = vmatpush1.msra.mxu0 0.0
    %1594 = vmatprep.subr.mxu0 0.0
    %1595 = vmatpush1.msra.mxu0 0.0
    %1596 = vmatprep.subr.mxu0 0.0
    %1597 = vmatpush1.msra.mxu0 0.0
    %1598 = vmatprep.subr.mxu0 0.0
    %1599 = vmatpush1.msra.mxu0 0.0
    %1600 = vmatprep.subr.mxu0 0.0
    %1601 = vmatpush1.msra.mxu0 0.0
    %1602 = vmatprep.subr.mxu0 0.0
    %1603 = vmatpush1.msra.mxu0 0.0
    %1604 = vmatprep.subr.mxu0 0.0
    %1605 = vmatpush1.msra.mxu0 0.0
    %1606 = vmatprep.subr.mxu0 0.0
    %1607 = vmatpush1.msra.mxu0 0.0
    %1608 = vmatprep.subr.mxu0 0.0
    %1609 = vmatpush1.msra.mxu0 0.0
    %1610 = vmatprep.subr.mxu0 0.0
    %1611 = vmatpush1.msra.mxu0 0.0
    %1612 = vmatprep.subr.mxu0 0.0
    %1613 = vmatpush1.msra.mxu0 0.0
    %1614 = vmatprep.subr.mxu0 0.0
    %1615 = vmatpush1.msra.mxu0 0.0
    %1616 = vmatprep.subr.mxu0 0.0
    %1617 = vmatpush1.msra.mxu0 0.0
    %1618 = vmatprep.subr.mxu0 0.0
    %1619 = vmatpush1.msra.mxu0 0.0
    %1620 = vmatprep.subr.mxu0 0.0
    %1621 = vmatpush1.msra.mxu0 0.0
    %1622 = vmatprep.subr.mxu0 0.0
    %1623 = vmatpush1.msra.mxu0 0.0
    %1624 = vmatprep.subr.mxu0 0.0
    %1625 = vmatpush1.msra.mxu0 0.0
    %1626 = vmatprep.subr.mxu0 0.0
    %1627 = vmatpush1.msra.mxu0 0.0
    %1628 = vmatprep.subr.mxu0 0.0
    %1629 = vmatpush1.msra.mxu0 0.0
    %1630 = vmatprep.subr.mxu0 0.0
    %1631 = vmatpush1.msra.mxu0 0.0
    %1632 = vmatprep.mubr.f32.mxu0 0.0
    %1633 = vmatmul.mubr.f32.gmra.mrb[0].mxu0 %v1566
    %v1634 = vpop.f32.mrb[0].mxu0
    %v1635 = vadd.f32 0.0, %v1634
    %v1636 = vpop.f32.mrb[0].mxu0
    %1637 = vdwg.mxu0
    %v1638 = vadd.f32 %v1029, %v1635
    %v1639 = vxor.u32 %v1638, 2147483648
    %v1640 = vmul.f32 %v1639, 1.442695
    %v1641 = vpow.pop %v1640
    %v1642 = vadd.f32 %v1641, 1.0
    %v1643 = vrcp.pop %v1642
    %v1644 = vmul.f32 1.0, %v1643
    %v1645 = vtanh.pop %v1638
    %v1646 = vmul.f32 %v1644, %v1556
    %1648 = vrot.lane.b32.xlu0 %v1645, 64
    %v1649 = vpop.permute.xlu0 %1648
    %v1651 = vmul.f32 %v1644, %v1649
    %1653 = vrot.lane.b32.xlu0 %v1651, 32
    %v1654 = vpop.permute.xlu0 %1653
    %v1656 = vadd.f32 %v1646, %v1654
    %v1657 = vtanh.pop %v1656
    %1659 = vrot.lane.b32.xlu0 %v1657, 64
    %v1660 = vpop.permute.xlu0 %1659
    %v1662 = vmul.f32 %v1644, %v1660
    %1664 = vrot.lane.b32.xlu0 %v1662, 32
    %v1665 = vpop.permute.xlu0 %1664
    %v1666 = vsel %vm60, %v1665, 0
    %1668 = vmatprep.subr.mxu0 0.0
    %1669 = vmatpush1.msra.mxu0 %v1037
    %1670 = vmatprep.subr.mxu0 0.0
    %1671 = vmatpush1.msra.mxu0 %v1038
    %1672 = vmatprep.subr.mxu0 0.0
    %1673 = vmatpush1.msra.mxu0 %v1039
    %1674 = vmatprep.subr.mxu0 0.0
    %1675 = vmatpush1.msra.mxu0 %v1040
    %1676 = vmatprep.subr.mxu0 0.0
    %1677 = vmatpush1.msra.mxu0 0.0
    %1678 = vmatprep.subr.mxu0 0.0
    %1679 = vmatpush1.msra.mxu0 0.0
    %1680 = vmatprep.subr.mxu0 0.0
    %1681 = vmatpush1.msra.mxu0 0.0
    %1682 = vmatprep.subr.mxu0 0.0
    %1683 = vmatpush1.msra.mxu0 0.0
    %1684 = vmatprep.subr.mxu0 0.0
    %1685 = vmatpush1.msra.mxu0 0.0
    %1686 = vmatprep.subr.mxu0 0.0
    %1687 = vmatpush1.msra.mxu0 0.0
    %1688 = vmatprep.subr.mxu0 0.0
    %1689 = vmatpush1.msra.mxu0 0.0
    %1690 = vmatprep.subr.mxu0 0.0
    %1691 = vmatpush1.msra.mxu0 0.0
    %1692 = vmatprep.subr.mxu0 0.0
    %1693 = vmatpush1.msra.mxu0 0.0
    %1694 = vmatprep.subr.mxu0 0.0
    %1695 = vmatpush1.msra.mxu0 0.0
    %1696 = vmatprep.subr.mxu0 0.0
    %1697 = vmatpush1.msra.mxu0 0.0
    %1698 = vmatprep.subr.mxu0 0.0
    %1699 = vmatpush1.msra.mxu0 0.0
    %1700 = vmatprep.subr.mxu0 0.0
    %1701 = vmatpush1.msra.mxu0 0.0
    %1702 = vmatprep.subr.mxu0 0.0
    %1703 = vmatpush1.msra.mxu0 0.0
    %1704 = vmatprep.subr.mxu0 0.0
    %1705 = vmatpush1.msra.mxu0 0.0
    %1706 = vmatprep.subr.mxu0 0.0
    %1707 = vmatpush1.msra.mxu0 0.0
    %1708 = vmatprep.subr.mxu0 0.0
    %1709 = vmatpush1.msra.mxu0 0.0
    %1710 = vmatprep.subr.mxu0 0.0
    %1711 = vmatpush1.msra.mxu0 0.0
    %1712 = vmatprep.subr.mxu0 0.0
    %1713 = vmatpush1.msra.mxu0 0.0
    %1714 = vmatprep.subr.mxu0 0.0
    %1715 = vmatpush1.msra.mxu0 0.0
    %1716 = vmatprep.subr.mxu0 0.0
    %1717 = vmatpush1.msra.mxu0 0.0
    %1718 = vmatprep.subr.mxu0 0.0
    %1719 = vmatpush1.msra.mxu0 0.0
    %1720 = vmatprep.subr.mxu0 0.0
    %1721 = vmatpush1.msra.mxu0 0.0
    %1722 = vmatprep.subr.mxu0 0.0
    %1723 = vmatpush1.msra.mxu0 0.0
    %1724 = vmatprep.subr.mxu0 0.0
    %1725 = vmatpush1.msra.mxu0 0.0
    %1726 = vmatprep.subr.mxu0 0.0
    %1727 = vmatpush1.msra.mxu0 0.0
    %1728 = vmatprep.subr.mxu0 0.0
    %1729 = vmatpush1.msra.mxu0 0.0
    %1730 = vmatprep.subr.mxu0 0.0
    %1731 = vmatpush1.msra.mxu0 0.0
    %1732 = vmatprep.mubr.f32.mxu0 0.0
    %1733 = vmatmul.mubr.f32.gmra.mrb[0].mxu0 %v1666
    %v1734 = vpop.f32.mrb[0].mxu0
    %v1735 = vadd.f32 0.0, %v1734
    %v1736 = vpop.f32.mrb[0].mxu0
    %1737 = vdwg.mxu0
    %v1738 = vadd.f32 %v1034, %v1735
    %v1739 = vxor.u32 %v1738, 2147483648
    %v1740 = vmul.f32 %v1739, 1.442695
    %v1741 = vpow.pop %v1740
    %v1742 = vadd.f32 %v1741, 1.0
    %v1743 = vrcp.pop %v1742
    %v1744 = vmul.f32 1.0, %v1743
    %v1745 = vtanh.pop %v1738
    %v1746 = vmul.f32 %v1744, %v1656
    %1748 = vrot.lane.b32.xlu0 %v1745, 64
    %v1749 = vpop.permute.xlu0 %1748
    %v1751 = vmul.f32 %v1744, %v1749
    %1753 = vrot.lane.b32.xlu0 %v1751, 32
    %v1754 = vpop.permute.xlu0 %1753
    %v1756 = vadd.f32 %v1746, %v1754
    %v1757 = vtanh.pop %v1756
    %1759 = vrot.lane.b32.xlu0 %v1757, 64
    %v1760 = vpop.permute.xlu0 %1759
    %v1762 = vmul.f32 %v1744, %v1760
    %1764 = vrot.lane.b32.xlu0 %v1162, 64
    %v1765 = vpop.permute.xlu0 %1764
    %1767 = vrot.lane.b32.xlu0 %v1262, 96
    %v1768 = vpop.permute.xlu0 %1767
    %1771 = vrot.lane.b32.xlu0 %v1562, 64
    %v1772 = vpop.permute.xlu0 %1771
    %1774 = vrot.lane.b32.xlu0 %v1662, 96
    %v1775 = vpop.permute.xlu0 %1774
    %v1777 = vsel %vm60, %v1061, %v1765
    %vm1778 = vcmask 523264
    %v1779 = vsel %vm1778, %v1777, %v1768
    %vm1780 = vcmask 785408
    %v1781 = vsel %vm1780, %v1779, %v1362
    %v1782 = vsel %vm60, %v1465, %v1772
    %v1783 = vsel %vm1778, %v1782, %v1775
    %v1784 = vsel %vm1780, %v1783, %v1762
    %1785 = vst [vmem:[#allocation5] sm:$0xff] %v1781
    %1786 = vst [vmem:[#allocation5 + $0x8] sm:$0xff] %v1784
    // Predicated region
    $region34: #{tpu_custom_call.1} parent=1 // pred_check
      _
    $region35: #{tpu_custom_call.1} parent=1 // pred_check_branch
      %1788 = sbr.rel (0) target = $region37
    $region36: #{tpu_custom_call.1} parent=1 // pred_region
      %s1790 = ssub.s32 256, 256
      %1791 = vsyncadd [#allocation4], %s1790
      %s1793 = sshll.u32 [#allocation5], 4
      %s1794 = int_to_ptr.vmem [resolvable:$true] %s1793
      %1796 = dma.vmem_to_hbm [thread:$0]  %s1794, 256, %s7, [#allocation4]
    $region37: #{tpu_custom_call.1} parent=1 // pred_fallthru
      _
    // Predicated region
    $region38: #{tpu_custom_call.1} parent=1 // pred_check
      _
    $region39: #{tpu_custom_call.1} parent=1 // pred_check_branch
      %1798 = sbr.rel (0) target = $region41
    $region40: #{tpu_custom_call.1} parent=1 // pred_region
      %1799 = dma.done [#allocation4], 256
    $region41: #{tpu_custom_call.1} parent=1 // pred_fallthru
      _
    %1800 = vsyncpa [#allocation3], 1
    %1801 = vsyncpa [#allocation4], 1

</llo_original>
